<compile_context>
chip_gen: v5e
topology: v5e:2x2
jax: 0.10.0
libtpu: 0.0.40
codegen_flags: <defaults>
</compile_context>

<pallas_src>
import jax
import jax.numpy as jnp
from jax import lax
from jax.experimental import pallas as pl
from jax.experimental.pallas import tpu as pltpu


def residual_bottleneck_kernel(xt_ref, xm_ref, xb_ref, w1_ref, b1_ref,
                               w3_ref, b3_ref, w2_ref, b2_ref, o_ref):
    # xt/xb : (BB, 1, W, N)  f32   halo rows above / below the band
    # xm    : (BB, TH, W, N) f32   the band itself
    # w1:(N,Cp) bf16   b1:(1,Cp) f32
    # w3:(9,Cp,Cp) bf16 (row-major 3x3 taps)   b3:(1,Cp) f32
    # w2:(Cp,N) bf16   b2:(1,N) f32
    BB, TH, W, N = xm_ref.shape
    Cp = w1_ref.shape[1]
    M = BB * TH * W
    ME = BB * (TH + 2) * W

    band = pl.program_id(1)
    n_bands = pl.num_programs(1)

    # --- conv1x1 (N -> Cp) + bias + ReLU on band + 2 recomputed halo rows ---
    x_ext = jnp.concatenate([xt_ref[...], xm_ref[...], xb_ref[...]], axis=1)
    h1 = jnp.dot(x_ext.reshape(ME, N).astype(jnp.bfloat16), w1_ref[...],
                 preferred_element_type=jnp.float32)
    h1 = jnp.maximum(h1 + b1_ref[...], 0.0).reshape(BB, TH + 2, W, Cp)

    # Halo rows that fall outside the image are conv3's zero padding, not
    # relu(b1): mask them out (only at the first / last band).
    row = lax.broadcasted_iota(jnp.int32, (1, TH + 2, 1, Cp), 1)
    pad_row = ((row == 0) & (band == 0)) | \
              ((row == TH + 1) & (band == n_bands - 1))
    h1 = jnp.where(pad_row, 0.0, h1)

    # --- conv3x3 (Cp -> Cp), pad 1: nine accumulating MXU dots --------------
    # For tap (ky, kx):  out[y, x] += h1_ext[y + ky, x + kx - 1] @ w3[ky, kx]
    zcol = jnp.zeros((BB, TH, 1, Cp), jnp.float32)
    acc = jnp.zeros((M, Cp), jnp.float32)
    for ky in range(3):
        rows = h1[:, ky:ky + TH, :, :]                       # (BB, TH, W, Cp)
        for kx in range(3):
            if kx == 0:          # win[x] = rows[x - 1], zero at x = 0
                win = jnp.concatenate([zcol, rows[:, :, :W - 1, :]], axis=2)
            elif kx == 2:        # win[x] = rows[x + 1], zero at x = W - 1
                win = jnp.concatenate([rows[:, :, 1:, :], zcol], axis=2)
            else:                # center tap straight from the conv1 value
                win = rows
            acc += jnp.dot(win.reshape(M, Cp).astype(jnp.bfloat16),
                           w3_ref[ky * 3 + kx],
                           preferred_element_type=jnp.float32)
    h2 = jnp.maximum(acc + b3_ref[...], 0.0)                 # (M, Cp) f32

    # --- conv1x1 (Cp -> N) + bias + residual (re-read x for short liveness) -
    h3 = jnp.dot(h2.astype(jnp.bfloat16), w2_ref[...],
                 preferred_element_type=jnp.float32)
    out = xm_ref[...].reshape(M, N) + h3 + b2_ref[...]       # (M, N) f32
    o_ref[...] = out.reshape(BB, TH, W, N).astype(o_ref.dtype)


def residual_bottleneck(x_nhwc, params, *, band_rows=None):
    """x_nhwc: (B, H, W, N) float32; params = (w1, b1, w3, b3, w2, b2)."""
    B, H, W, N = x_nhwc.shape
    w1, b1, w3, b3, w2, b2 = params
    C = w1.shape[1]

    LANE = 128
    Cp = ((C + LANE - 1) // LANE) * LANE
    pc = Cp - C

    # Zero-pad the bottleneck channel to full 128-lane tiles; weights bf16
    # for the MXU, biases f32 for the VPU epilogues.
    w1p = jnp.pad(w1, ((0, 0), (0, pc))).astype(jnp.bfloat16)            # (N, Cp)
    b1p = jnp.pad(b1, ((0, 0), (0, pc))).astype(jnp.float32)             # (1, Cp)
    w3p = jnp.pad(w3, ((0, 0), (0, 0), (0, pc), (0, pc)))                # (3,3,Cp,Cp)
    w3p = w3p.reshape(9, Cp, Cp).astype(jnp.bfloat16)                    # (9,Cp,Cp)
    b3p = jnp.pad(b3, ((0, 0), (0, pc))).astype(jnp.float32)             # (1, Cp)
    w2p = jnp.pad(w2, ((0, pc), (0, 0))).astype(jnp.bfloat16)            # (Cp, N)
    b2p = b2.astype(jnp.float32)                                         # (1, N)

    # Band the H axis so the grid has >= 4 steps where possible (pipelined
    # DMA; both v7x TensorCores), while keeping M = TH*W rows per matmul
    # reasonably large. Bands are independent (halo is recomputed).
    if band_rows is None:
        TH = H
        while B * (H // TH) < 4 and TH % 2 == 0 and (TH // 2) * W >= 128:
            TH //= 2
    else:
        TH = band_rows
    assert H % TH == 0, "band_rows must divide H"
    nH = H // TH
    grid = (B, nH)

    def full_spec(a):
        zeros = (0,) * a.ndim
        return pl.BlockSpec(a.shape, lambda b, i: zeros)

    band_map = lambda b, i: (b, i, 0, 0)
    # Halo rows: clamp at the image edges; the kernel zeroes the out-of-image
    # conv1 result for those rows.
    top_map = lambda b, i: (b, jnp.maximum(i * TH - 1, 0), 0, 0)
    bot_map = lambda b, i: (b, jnp.minimum((i + 1) * TH, H - 1), 0, 0)

    flops = int(2 * B * H * W * (N * Cp + 9 * Cp * Cp + Cp * N))
    bytes_accessed = int(
        2 * x_nhwc.size * x_nhwc.dtype.itemsize
        + sum(int(p.size) * p.dtype.itemsize
              for p in (w1p, b1p, w3p, b3p, w2p, b2p)))

    return pl.pallas_call(
        residual_bottleneck_kernel,
        out_shape=jax.ShapeDtypeStruct((B, H, W, N), x_nhwc.dtype),
        grid=grid,
        in_specs=[
            pl.BlockSpec((1, 1, W, N), top_map),      # halo row above band
            pl.BlockSpec((1, TH, W, N), band_map),    # band
            pl.BlockSpec((1, 1, W, N), bot_map),      # halo row below band
            full_spec(w1p), full_spec(b1p),
            full_spec(w3p), full_spec(b3p),
            full_spec(w2p), full_spec(b2p),
        ],
        out_specs=pl.BlockSpec((1, TH, W, N), band_map),
        compiler_params=pltpu.CompilerParams(
            dimension_semantics=("parallel", "parallel"),
            vmem_limit_bytes=48 * 1024 * 1024),
        cost_estimate=pl.CostEstimate(flops=flops, transcendentals=0,
                                      bytes_accessed=bytes_accessed),
    )(x_nhwc, x_nhwc, x_nhwc, w1p, b1p, w3p, b3p, w2p, b2p)


def reference(x_nhwc, params):
    """Plain-JAX f32 reference (NHWC convolutions) for validation."""
    w1, b1, w3, b3, w2, b2 = params
    N, C = w1.shape
    dn = ('NHWC', 'HWIO', 'NHWC')
    h = lax.conv_general_dilated(x_nhwc, w1.reshape(1, 1, N, C), (1, 1),
                                 'VALID', dimension_numbers=dn)
    h = jnp.maximum(h + b1.reshape(1, 1, 1, C), 0.0)
    h = lax.conv_general_dilated(h, w3, (1, 1), 'SAME', dimension_numbers=dn)
    h = jnp.maximum(h + b3.reshape(1, 1, 1, C), 0.0)
    h = lax.conv_general_dilated(h, w2.reshape(1, 1, C, N), (1, 1),
                                 'VALID', dimension_numbers=dn)
    h = h + b2.reshape(1, 1, 1, N)
    return x_nhwc + h


if __name__ == "__main__":
    # Small, TPU-friendly shapes consistent with the module (N must be even).
    B, N, H, W = 2, 128, 16, 16
    C = N // 2

    key = jax.random.PRNGKey(0)
    ks = jax.random.split(key, 7)
    scale = 0.1
    x_nchw = jax.random.normal(ks[0], (B, N, H, W), jnp.float32)
    w1 = scale * jax.random.normal(ks[1], (N, C), jnp.float32)        # 1x1 N->C
    b1 = scale * jax.random.normal(ks[2], (1, C), jnp.float32)
    w3 = scale * jax.random.normal(ks[3], (3, 3, C, C), jnp.float32)  # 3x3 HWIO
    b3 = scale * jax.random.normal(ks[4], (1, C), jnp.float32)
    w2 = scale * jax.random.normal(ks[5], (C, N), jnp.float32)        # 1x1 C->N
    b2 = scale * jax.random.normal(ks[6], (1, N), jnp.float32)
    params = (w1, b1, w3, b3, w2, b2)

    # NCHW (PyTorch) -> NHWC (kernel layout)
    x_nhwc = jnp.transpose(x_nchw, (0, 2, 3, 1))

    out_nhwc = residual_bottleneck(x_nhwc, params)
    out_nchw = jnp.transpose(out_nhwc, (0, 3, 1, 2))
    jax.block_until_ready(out_nchw)

    ref_nchw = jnp.transpose(reference(x_nhwc, params), (0, 3, 1, 2))
    assert out_nchw.shape == (B, N, H, W)
    max_err = float(jnp.max(jnp.abs(out_nchw - ref_nchw)))
    # bf16 matmul inputs -> bf16-aware tolerance vs the f32 reference.
    assert jnp.allclose(out_nchw, ref_nchw, atol=5e-2, rtol=5e-2), \
        f"mismatch vs reference (max abs err {max_err})"

    print("KERNEL_OK")
</pallas_src>

<mosaic_0001>
module attributes {stable_mosaic.version = 11 : i64} {
  func.func @residual_bottleneck_kernel(%arg0: i32, %arg1: i32, %arg2: memref<1x1x16x128xf32, #tpu.memory_space<vmem>>, %arg3: memref<1x8x16x128xf32, #tpu.memory_space<vmem>>, %arg4: memref<1x1x16x128xf32, #tpu.memory_space<vmem>>, %arg5: memref<128x128xbf16, #tpu.memory_space<vmem>>, %arg6: memref<1x128xf32, #tpu.memory_space<vmem>>, %arg7: memref<9x128x128xbf16, #tpu.memory_space<vmem>>, %arg8: memref<1x128xf32, #tpu.memory_space<vmem>>, %arg9: memref<128x128xbf16, #tpu.memory_space<vmem>>, %arg10: memref<1x128xf32, #tpu.memory_space<vmem>>, %arg11: memref<1x8x16x128xf32, #tpu.memory_space<vmem>>) attributes {dimension_semantics = [#tpu.dimension_semantics<parallel>, #tpu.dimension_semantics<parallel>], iteration_bounds = array<i64: 2, 2>, scalar_prefetch = 0 : i64, scratch_operands = 0 : i64, tpu.core_type = #tpu.core_type<tc>, window_params = [{transform_indices = @transform_0, window_bounds = array<i64: 1, 1, 16, 128>}, {transform_indices = @transform_1, window_bounds = array<i64: 1, 8, 16, 128>}, {transform_indices = @transform_2, window_bounds = array<i64: 1, 1, 16, 128>}, {pipeline_mode = #tpu.pipeline_mode<synchronous>, transform_indices = @transform_3, window_bounds = array<i64: 128, 128>}, {pipeline_mode = #tpu.pipeline_mode<synchronous>, transform_indices = @transform_4, window_bounds = array<i64: 1, 128>}, {pipeline_mode = #tpu.pipeline_mode<synchronous>, transform_indices = @transform_5, window_bounds = array<i64: 9, 128, 128>}, {pipeline_mode = #tpu.pipeline_mode<synchronous>, transform_indices = @transform_6, window_bounds = array<i64: 1, 128>}, {pipeline_mode = #tpu.pipeline_mode<synchronous>, transform_indices = @transform_7, window_bounds = array<i64: 128, 128>}, {pipeline_mode = #tpu.pipeline_mode<synchronous>, transform_indices = @transform_8, window_bounds = array<i64: 1, 128>}, {transform_indices = @transform_9, window_bounds = array<i64: 1, 8, 16, 128>}]} {
    %c0 = arith.constant 0 : index
    %c0_0 = arith.constant 0 : index
    %c0_1 = arith.constant 0 : index
    %c0_2 = arith.constant 0 : index
    %0 = vector.load %arg2[%c0, %c0_0, %c0_1, %c0_2] : memref<1x1x16x128xf32, #tpu.memory_space<vmem>>, vector<1x1x16x128xf32>
    %c0_3 = arith.constant 0 : index
    %c0_4 = arith.constant 0 : index
    %c0_5 = arith.constant 0 : index
    %c0_6 = arith.constant 0 : index
    %1 = vector.load %arg3[%c0_3, %c0_4, %c0_5, %c0_6] : memref<1x8x16x128xf32, #tpu.memory_space<vmem>>, vector<1x8x16x128xf32>
    %c0_7 = arith.constant 0 : index
    %c0_8 = arith.constant 0 : index
    %c0_9 = arith.constant 0 : index
    %c0_10 = arith.constant 0 : index
    %2 = vector.load %arg4[%c0_7, %c0_8, %c0_9, %c0_10] : memref<1x1x16x128xf32, #tpu.memory_space<vmem>>, vector<1x1x16x128xf32>
    %3 = tpu.concatenate %0, %1, %2 in 1 : vector<1x1x16x128xf32>, vector<1x8x16x128xf32>, vector<1x1x16x128xf32> -> vector<1x10x16x128xf32>
    %4 = vector.shape_cast %3 : vector<1x10x16x128xf32> to vector<160x128xf32>
    %5 = arith.truncf %4 : vector<160x128xf32> to vector<160x128xbf16>
    %c0_11 = arith.constant 0 : index
    %c0_12 = arith.constant 0 : index
    %6 = vector.load %arg5[%c0_11, %c0_12] : memref<128x128xbf16, #tpu.memory_space<vmem>>, vector<128x128xbf16>
    %cst = arith.constant dense<0.000000e+00> : vector<160x128xf32>
    %7 = tpu.matmul %5, %6, %cst {dimension_numbers = #tpu.dot_dimension_numbers<[1], [0], [0], [1], [0, 0, 1, 1], [], []>} : vector<160x128xbf16>, vector<128x128xbf16>, vector<160x128xf32> -> vector<160x128xf32>
    %c0_13 = arith.constant 0 : index
    %c0_14 = arith.constant 0 : index
    %8 = vector.load %arg6[%c0_13, %c0_14] : memref<1x128xf32, #tpu.memory_space<vmem>>, vector<1x128xf32>
    %9 = vector.broadcast %8 : vector<1x128xf32> to vector<160x128xf32>
    %10 = arith.addf %7, %9 : vector<160x128xf32>
    %cst_15 = arith.constant 0.000000e+00 : f32
    %11 = vector.broadcast %cst_15 : f32 to vector<160x128xf32>
    %12 = arith.maximumf %10, %11 : vector<160x128xf32>
    %13 = vector.shape_cast %12 : vector<160x128xf32> to vector<1x10x16x128xf32>
    %14 = tpu.iota {dimensions = array<i32: 1>} : vector<1x10x1x128xi32>
    %c0_i32 = arith.constant 0 : i32
    %15 = vector.broadcast %c0_i32 : i32 to vector<1x10x1x128xi32>
    %16 = arith.cmpi eq, %14, %15 : vector<1x10x1x128xi32>
    %c0_i32_16 = arith.constant 0 : i32
    %17 = arith.cmpi eq, %arg1, %c0_i32_16 : i32
    %18 = vector.broadcast %17 : i1 to vector<1x10x1x128xi1>
    %19 = arith.andi %16, %18 : vector<1x10x1x128xi1>
    %c9_i32 = arith.constant 9 : i32
    %20 = vector.broadcast %c9_i32 : i32 to vector<1x10x1x128xi32>
    %21 = arith.cmpi eq, %14, %20 : vector<1x10x1x128xi32>
    %c1_i32 = arith.constant 1 : i32
    %22 = arith.cmpi eq, %arg1, %c1_i32 : i32
    %23 = vector.broadcast %22 : i1 to vector<1x10x1x128xi1>
    %24 = arith.andi %21, %23 : vector<1x10x1x128xi1>
    %25 = arith.ori %19, %24 : vector<1x10x1x128xi1>
    %cst_17 = arith.constant 0.000000e+00 : f32
    %26 = vector.shape_cast %25 : vector<1x10x1x128xi1> to vector<1x10x1x128xi1>
    %27 = vector.broadcast %26 : vector<1x10x1x128xi1> to vector<1x10x16x128xi1>
    %28 = vector.broadcast %cst_17 : f32 to vector<1x10x16x128xf32>
    %29 = arith.select %27, %28, %13 : vector<1x10x16x128xi1>, vector<1x10x16x128xf32>
    %cst_18 = arith.constant 0.000000e+00 : f32
    %30 = vector.broadcast %cst_18 : f32 to vector<1x8x1x128xf32>
    %cst_19 = arith.constant 0.000000e+00 : f32
    %31 = vector.broadcast %cst_19 : f32 to vector<128x128xf32>
    %32 = vector.extract_strided_slice %29 {offsets = [0, 0, 0, 0], sizes = [1, 8, 16, 128], strides = [1, 1, 1, 1]} : vector<1x10x16x128xf32> to vector<1x8x16x128xf32>
    %33 = vector.extract_strided_slice %32 {offsets = [0, 0, 0, 0], sizes = [1, 8, 15, 128], strides = [1, 1, 1, 1]} : vector<1x8x16x128xf32> to vector<1x8x15x128xf32>
    %34 = tpu.concatenate %30, %33 in 2 : vector<1x8x1x128xf32>, vector<1x8x15x128xf32> -> vector<1x8x16x128xf32>
    %35 = vector.shape_cast %34 : vector<1x8x16x128xf32> to vector<128x128xf32>
    %36 = arith.truncf %35 : vector<128x128xf32> to vector<128x128xbf16>
    %c0_20 = arith.constant 0 : index
    %c0_21 = arith.constant 0 : index
    %c0_22 = arith.constant 0 : index
    %37 = vector.load %arg7[%c0_20, %c0_21, %c0_22] : memref<9x128x128xbf16, #tpu.memory_space<vmem>>, vector<1x128x128xbf16>
    %38 = vector.shape_cast %37 : vector<1x128x128xbf16> to vector<128x128xbf16>
    %cst_23 = arith.constant dense<0.000000e+00> : vector<128x128xf32>
    %39 = tpu.matmul %36, %38, %cst_23 {dimension_numbers = #tpu.dot_dimension_numbers<[1], [0], [0], [1], [0, 0, 1, 1], [], []>} : vector<128x128xbf16>, vector<128x128xbf16>, vector<128x128xf32> -> vector<128x128xf32>
    %40 = arith.addf %31, %39 : vector<128x128xf32>
    %41 = vector.shape_cast %32 : vector<1x8x16x128xf32> to vector<128x128xf32>
    %42 = arith.truncf %41 : vector<128x128xf32> to vector<128x128xbf16>
    %c1 = arith.constant 1 : index
    %c0_24 = arith.constant 0 : index
    %c0_25 = arith.constant 0 : index
    %43 = vector.load %arg7[%c1, %c0_24, %c0_25] : memref<9x128x128xbf16, #tpu.memory_space<vmem>>, vector<1x128x128xbf16>
    %44 = vector.shape_cast %43 : vector<1x128x128xbf16> to vector<128x128xbf16>
    %cst_26 = arith.constant dense<0.000000e+00> : vector<128x128xf32>
    %45 = tpu.matmul %42, %44, %cst_26 {dimension_numbers = #tpu.dot_dimension_numbers<[1], [0], [0], [1], [0, 0, 1, 1], [], []>} : vector<128x128xbf16>, vector<128x128xbf16>, vector<128x128xf32> -> vector<128x128xf32>
    %46 = arith.addf %40, %45 : vector<128x128xf32>
    %47 = vector.extract_strided_slice %32 {offsets = [0, 0, 1, 0], sizes = [1, 8, 15, 128], strides = [1, 1, 1, 1]} : vector<1x8x16x128xf32> to vector<1x8x15x128xf32>
    %48 = tpu.concatenate %47, %30 in 2 : vector<1x8x15x128xf32>, vector<1x8x1x128xf32> -> vector<1x8x16x128xf32>
    %49 = vector.shape_cast %48 : vector<1x8x16x128xf32> to vector<128x128xf32>
    %50 = arith.truncf %49 : vector<128x128xf32> to vector<128x128xbf16>
    %c2 = arith.constant 2 : index
    %c0_27 = arith.constant 0 : index
    %c0_28 = arith.constant 0 : index
    %51 = vector.load %arg7[%c2, %c0_27, %c0_28] : memref<9x128x128xbf16, #tpu.memory_space<vmem>>, vector<1x128x128xbf16>
    %52 = vector.shape_cast %51 : vector<1x128x128xbf16> to vector<128x128xbf16>
    %cst_29 = arith.constant dense<0.000000e+00> : vector<128x128xf32>
    %53 = tpu.matmul %50, %52, %cst_29 {dimension_numbers = #tpu.dot_dimension_numbers<[1], [0], [0], [1], [0, 0, 1, 1], [], []>} : vector<128x128xbf16>, vector<128x128xbf16>, vector<128x128xf32> -> vector<128x128xf32>
    %54 = arith.addf %46, %53 : vector<128x128xf32>
    %55 = vector.extract_strided_slice %29 {offsets = [0, 1, 0, 0], sizes = [1, 8, 16, 128], strides = [1, 1, 1, 1]} : vector<1x10x16x128xf32> to vector<1x8x16x128xf32>
    %56 = vector.extract_strided_slice %55 {offsets = [0, 0, 0, 0], sizes = [1, 8, 15, 128], strides = [1, 1, 1, 1]} : vector<1x8x16x128xf32> to vector<1x8x15x128xf32>
    %57 = tpu.concatenate %30, %56 in 2 : vector<1x8x1x128xf32>, vector<1x8x15x128xf32> -> vector<1x8x16x128xf32>
    %58 = vector.shape_cast %57 : vector<1x8x16x128xf32> to vector<128x128xf32>
    %59 = arith.truncf %58 : vector<128x128xf32> to vector<128x128xbf16>
    %c3 = arith.constant 3 : index
    %c0_30 = arith.constant 0 : index
    %c0_31 = arith.constant 0 : index
    %60 = vector.load %arg7[%c3, %c0_30, %c0_31] : memref<9x128x128xbf16, #tpu.memory_space<vmem>>, vector<1x128x128xbf16>
    %61 = vector.shape_cast %60 : vector<1x128x128xbf16> to vector<128x128xbf16>
    %cst_32 = arith.constant dense<0.000000e+00> : vector<128x128xf32>
    %62 = tpu.matmul %59, %61, %cst_32 {dimension_numbers = #tpu.dot_dimension_numbers<[1], [0], [0], [1], [0, 0, 1, 1], [], []>} : vector<128x128xbf16>, vector<128x128xbf16>, vector<128x128xf32> -> vector<128x128xf32>
    %63 = arith.addf %54, %62 : vector<128x128xf32>
    %64 = vector.shape_cast %55 : vector<1x8x16x128xf32> to vector<128x128xf32>
    %65 = arith.truncf %64 : vector<128x128xf32> to vector<128x128xbf16>
    %c4 = arith.constant 4 : index
    %c0_33 = arith.constant 0 : index
    %c0_34 = arith.constant 0 : index
    %66 = vector.load %arg7[%c4, %c0_33, %c0_34] : memref<9x128x128xbf16, #tpu.memory_space<vmem>>, vector<1x128x128xbf16>
    %67 = vector.shape_cast %66 : vector<1x128x128xbf16> to vector<128x128xbf16>
    %cst_35 = arith.constant dense<0.000000e+00> : vector<128x128xf32>
    %68 = tpu.matmul %65, %67, %cst_35 {dimension_numbers = #tpu.dot_dimension_numbers<[1], [0], [0], [1], [0, 0, 1, 1], [], []>} : vector<128x128xbf16>, vector<128x128xbf16>, vector<128x128xf32> -> vector<128x128xf32>
    %69 = arith.addf %63, %68 : vector<128x128xf32>
    %70 = vector.extract_strided_slice %55 {offsets = [0, 0, 1, 0], sizes = [1, 8, 15, 128], strides = [1, 1, 1, 1]} : vector<1x8x16x128xf32> to vector<1x8x15x128xf32>
    %71 = tpu.concatenate %70, %30 in 2 : vector<1x8x15x128xf32>, vector<1x8x1x128xf32> -> vector<1x8x16x128xf32>
    %72 = vector.shape_cast %71 : vector<1x8x16x128xf32> to vector<128x128xf32>
    %73 = arith.truncf %72 : vector<128x128xf32> to vector<128x128xbf16>
    %c5 = arith.constant 5 : index
    %c0_36 = arith.constant 0 : index
    %c0_37 = arith.constant 0 : index
    %74 = vector.load %arg7[%c5, %c0_36, %c0_37] : memref<9x128x128xbf16, #tpu.memory_space<vmem>>, vector<1x128x128xbf16>
    %75 = vector.shape_cast %74 : vector<1x128x128xbf16> to vector<128x128xbf16>
    %cst_38 = arith.constant dense<0.000000e+00> : vector<128x128xf32>
    %76 = tpu.matmul %73, %75, %cst_38 {dimension_numbers = #tpu.dot_dimension_numbers<[1], [0], [0], [1], [0, 0, 1, 1], [], []>} : vector<128x128xbf16>, vector<128x128xbf16>, vector<128x128xf32> -> vector<128x128xf32>
    %77 = arith.addf %69, %76 : vector<128x128xf32>
    %78 = vector.extract_strided_slice %29 {offsets = [0, 2, 0, 0], sizes = [1, 8, 16, 128], strides = [1, 1, 1, 1]} : vector<1x10x16x128xf32> to vector<1x8x16x128xf32>
    %79 = vector.extract_strided_slice %78 {offsets = [0, 0, 0, 0], sizes = [1, 8, 15, 128], strides = [1, 1, 1, 1]} : vector<1x8x16x128xf32> to vector<1x8x15x128xf32>
    %80 = tpu.concatenate %30, %79 in 2 : vector<1x8x1x128xf32>, vector<1x8x15x128xf32> -> vector<1x8x16x128xf32>
    %81 = vector.shape_cast %80 : vector<1x8x16x128xf32> to vector<128x128xf32>
    %82 = arith.truncf %81 : vector<128x128xf32> to vector<128x128xbf16>
    %c6 = arith.constant 6 : index
    %c0_39 = arith.constant 0 : index
    %c0_40 = arith.constant 0 : index
    %83 = vector.load %arg7[%c6, %c0_39, %c0_40] : memref<9x128x128xbf16, #tpu.memory_space<vmem>>, vector<1x128x128xbf16>
    %84 = vector.shape_cast %83 : vector<1x128x128xbf16> to vector<128x128xbf16>
    %cst_41 = arith.constant dense<0.000000e+00> : vector<128x128xf32>
    %85 = tpu.matmul %82, %84, %cst_41 {dimension_numbers = #tpu.dot_dimension_numbers<[1], [0], [0], [1], [0, 0, 1, 1], [], []>} : vector<128x128xbf16>, vector<128x128xbf16>, vector<128x128xf32> -> vector<128x128xf32>
    %86 = arith.addf %77, %85 : vector<128x128xf32>
    %87 = vector.shape_cast %78 : vector<1x8x16x128xf32> to vector<128x128xf32>
    %88 = arith.truncf %87 : vector<128x128xf32> to vector<128x128xbf16>
    %c7 = arith.constant 7 : index
    %c0_42 = arith.constant 0 : index
    %c0_43 = arith.constant 0 : index
    %89 = vector.load %arg7[%c7, %c0_42, %c0_43] : memref<9x128x128xbf16, #tpu.memory_space<vmem>>, vector<1x128x128xbf16>
    %90 = vector.shape_cast %89 : vector<1x128x128xbf16> to vector<128x128xbf16>
    %cst_44 = arith.constant dense<0.000000e+00> : vector<128x128xf32>
    %91 = tpu.matmul %88, %90, %cst_44 {dimension_numbers = #tpu.dot_dimension_numbers<[1], [0], [0], [1], [0, 0, 1, 1], [], []>} : vector<128x128xbf16>, vector<128x128xbf16>, vector<128x128xf32> -> vector<128x128xf32>
    %92 = arith.addf %86, %91 : vector<128x128xf32>
    %93 = vector.extract_strided_slice %78 {offsets = [0, 0, 1, 0], sizes = [1, 8, 15, 128], strides = [1, 1, 1, 1]} : vector<1x8x16x128xf32> to vector<1x8x15x128xf32>
    %94 = tpu.concatenate %93, %30 in 2 : vector<1x8x15x128xf32>, vector<1x8x1x128xf32> -> vector<1x8x16x128xf32>
    %95 = vector.shape_cast %94 : vector<1x8x16x128xf32> to vector<128x128xf32>
    %96 = arith.truncf %95 : vector<128x128xf32> to vector<128x128xbf16>
    %c8 = arith.constant 8 : index
    %c0_45 = arith.constant 0 : index
    %c0_46 = arith.constant 0 : index
    %97 = vector.load %arg7[%c8, %c0_45, %c0_46] : memref<9x128x128xbf16, #tpu.memory_space<vmem>>, vector<1x128x128xbf16>
    %98 = vector.shape_cast %97 : vector<1x128x128xbf16> to vector<128x128xbf16>
    %cst_47 = arith.constant dense<0.000000e+00> : vector<128x128xf32>
    %99 = tpu.matmul %96, %98, %cst_47 {dimension_numbers = #tpu.dot_dimension_numbers<[1], [0], [0], [1], [0, 0, 1, 1], [], []>} : vector<128x128xbf16>, vector<128x128xbf16>, vector<128x128xf32> -> vector<128x128xf32>
    %100 = arith.addf %92, %99 : vector<128x128xf32>
    %c0_48 = arith.constant 0 : index
    %c0_49 = arith.constant 0 : index
    %101 = vector.load %arg8[%c0_48, %c0_49] : memref<1x128xf32, #tpu.memory_space<vmem>>, vector<1x128xf32>
    %102 = vector.broadcast %101 : vector<1x128xf32> to vector<128x128xf32>
    %103 = arith.addf %100, %102 : vector<128x128xf32>
    %cst_50 = arith.constant 0.000000e+00 : f32
    %104 = vector.broadcast %cst_50 : f32 to vector<128x128xf32>
    %105 = arith.maximumf %103, %104 : vector<128x128xf32>
    %106 = arith.truncf %105 : vector<128x128xf32> to vector<128x128xbf16>
    %c0_51 = arith.constant 0 : index
    %c0_52 = arith.constant 0 : index
    %107 = vector.load %arg9[%c0_51, %c0_52] : memref<128x128xbf16, #tpu.memory_space<vmem>>, vector<128x128xbf16>
    %cst_53 = arith.constant dense<0.000000e+00> : vector<128x128xf32>
    %108 = tpu.matmul %106, %107, %cst_53 {dimension_numbers = #tpu.dot_dimension_numbers<[1], [0], [0], [1], [0, 0, 1, 1], [], []>} : vector<128x128xbf16>, vector<128x128xbf16>, vector<128x128xf32> -> vector<128x128xf32>
    %c0_54 = arith.constant 0 : index
    %c0_55 = arith.constant 0 : index
    %c0_56 = arith.constant 0 : index
    %c0_57 = arith.constant 0 : index
    %109 = vector.load %arg3[%c0_54, %c0_55, %c0_56, %c0_57] : memref<1x8x16x128xf32, #tpu.memory_space<vmem>>, vector<1x8x16x128xf32>
    %110 = vector.shape_cast %109 : vector<1x8x16x128xf32> to vector<128x128xf32>
    %111 = arith.addf %110, %108 : vector<128x128xf32>
    %c0_58 = arith.constant 0 : index
    %c0_59 = arith.constant 0 : index
    %112 = vector.load %arg10[%c0_58, %c0_59] : memref<1x128xf32, #tpu.memory_space<vmem>>, vector<1x128xf32>
    %113 = vector.broadcast %112 : vector<1x128xf32> to vector<128x128xf32>
    %114 = arith.addf %111, %113 : vector<128x128xf32>
    %115 = vector.shape_cast %114 : vector<128x128xf32> to vector<1x8x16x128xf32>
    %c0_60 = arith.constant 0 : index
    %c0_61 = arith.constant 0 : index
    %c0_62 = arith.constant 0 : index
    %c0_63 = arith.constant 0 : index
    %116 = vector.load %arg11[%c0_60, %c0_61, %c0_62, %c0_63] : memref<1x8x16x128xf32, #tpu.memory_space<vmem>>, vector<1x8x16x128xf32>
    tpu.vector_store %arg11[%c0_60, %c0_61, %c0_62, %c0_63], %115 {strides = array<i32>} : memref<1x8x16x128xf32, #tpu.memory_space<vmem>>, vector<1x8x16x128xf32>,
    return
  }
  func.func @transform_0(%arg0: i32, %arg1: i32) -> (i32, i32, i32, i32) {
    %c8_i32 = arith.constant 8 : i32
    %0 = arith.muli %arg1, %c8_i32 : i32
    %c1_i32 = arith.constant 1 : i32
    %1 = arith.subi %0, %c1_i32 : i32
    %c0_i32 = arith.constant 0 : i32
    %2 = arith.maxsi %1, %c0_i32 : i32
    %c0_i32_0 = arith.constant 0 : i32
    %c0_i32_1 = arith.constant 0 : i32
    %c0_i32_2 = arith.constant 0 : i32
    return %arg0, %2, %c0_i32_0, %c0_i32_1 : i32, i32, i32, i32
  }
  func.func @transform_1(%arg0: i32, %arg1: i32) -> (i32, i32, i32, i32) {
    %c0_i32 = arith.constant 0 : i32
    %c0_i32_0 = arith.constant 0 : i32
    %c0_i32_1 = arith.constant 0 : i32
    return %arg0, %arg1, %c0_i32, %c0_i32_0 : i32, i32, i32, i32
  }
  func.func @transform_2(%arg0: i32, %arg1: i32) -> (i32, i32, i32, i32) {
    %c1_i32 = arith.constant 1 : i32
    %0 = arith.addi %arg1, %c1_i32 : i32
    %c8_i32 = arith.constant 8 : i32
    %1 = arith.muli %0, %c8_i32 : i32
    %c15_i32 = arith.constant 15 : i32
    %2 = arith.minsi %1, %c15_i32 : i32
    %c0_i32 = arith.constant 0 : i32
    %c0_i32_0 = arith.constant 0 : i32
    %c0_i32_1 = arith.constant 0 : i32
    return %arg0, %2, %c0_i32, %c0_i32_0 : i32, i32, i32, i32
  }
  func.func @transform_3(%arg0: i32, %arg1: i32) -> (i32, i32) {
    %c0_i32 = arith.constant 0 : i32
    %c0_i32_0 = arith.constant 0 : i32
    %c0_i32_1 = arith.constant 0 : i32
    return %c0_i32, %c0_i32_0 : i32, i32
  }
  func.func @transform_4(%arg0: i32, %arg1: i32) -> (i32, i32) {
    %c0_i32 = arith.constant 0 : i32
    %c0_i32_0 = arith.constant 0 : i32
    %c0_i32_1 = arith.constant 0 : i32
    return %c0_i32, %c0_i32_0 : i32, i32
  }
  func.func @transform_5(%arg0: i32, %arg1: i32) -> (i32, i32, i32) {
    %c0_i32 = arith.constant 0 : i32
    %c0_i32_0 = arith.constant 0 : i32
    %c0_i32_1 = arith.constant 0 : i32
    %c0_i32_2 = arith.constant 0 : i32
    return %c0_i32, %c0_i32_0, %c0_i32_1 : i32, i32, i32
  }
  func.func @transform_6(%arg0: i32, %arg1: i32) -> (i32, i32) {
    %c0_i32 = arith.constant 0 : i32
    %c0_i32_0 = arith.constant 0 : i32
    %c0_i32_1 = arith.constant 0 : i32
    return %c0_i32, %c0_i32_0 : i32, i32
  }
  func.func @transform_7(%arg0: i32, %arg1: i32) -> (i32, i32) {
    %c0_i32 = arith.constant 0 : i32
    %c0_i32_0 = arith.constant 0 : i32
    %c0_i32_1 = arith.constant 0 : i32
    return %c0_i32, %c0_i32_0 : i32, i32
  }
  func.func @transform_8(%arg0: i32, %arg1: i32) -> (i32, i32) {
    %c0_i32 = arith.constant 0 : i32
    %c0_i32_0 = arith.constant 0 : i32
    %c0_i32_1 = arith.constant 0 : i32
    return %c0_i32, %c0_i32_0 : i32, i32
  }
  func.func @transform_9(%arg0: i32, %arg1: i32) -> (i32, i32, i32, i32) {
    %c0_i32 = arith.constant 0 : i32
    %c0_i32_0 = arith.constant 0 : i32
    %c0_i32_1 = arith.constant 0 : i32
    return %arg0, %arg1, %c0_i32, %c0_i32_0 : i32, i32, i32, i32
  }
}

</mosaic_0001>

<llo_original>
// kernel: tpu_custom_call.1
$region0: #{tpu_custom_call.1}
  #allocation0 [shape = 'u32[]', space=smem, size = 0x4, offset = 0x4, fixed_abs, tag = 'smem constant byte address 0x4 - core index']
  #allocation1 [shape = 'u32[72,128]{1,0:T(1,128)}', space=vmem, size = 0x9000, scoped, tag = 'internal scratch']
  %s0 = inlined_call_operand.hbm [shape: f32[2,16,16,128], index: 0, kind: input, shape index: {}]
  %s1 = inlined_call_operand.hbm [shape: f32[2,16,16,128], index: 1, kind: input, shape index: {}]
  %s2 = inlined_call_operand.hbm [shape: f32[2,16,16,128], index: 2, kind: input, shape index: {}]
  %s3 = inlined_call_operand.hbm [shape: bf16[128,128], index: 3, kind: input, shape index: {}]
  %s4 = inlined_call_operand.vmem [shape: f32[1,128], index: 4, kind: input, shape index: {}]
  %s5 = inlined_call_operand.hbm [shape: bf16[9,128,128], index: 5, kind: input, shape index: {}]
  %s6 = inlined_call_operand.vmem [shape: f32[1,128], index: 6, kind: input, shape index: {}]
  %s7 = inlined_call_operand.hbm [shape: bf16[128,128], index: 7, kind: input, shape index: {}]
  %s8 = inlined_call_operand.vmem [shape: f32[1,128], index: 8, kind: input, shape index: {}]
  %s9 = inlined_call_operand.hbm [shape: f32[2,16,16,128], index: 9, kind: output, shape index: {}]
  %s10 = sld [smem:[#allocation0]]
  $region93: #{tpu_custom_call.1} parent=0
    _
  %s12 = ssub.s32 1, %s10
  %s13 = scalar_select 0, %s12, %s10
  $region1: #{tpu_custom_call.1} parent=0
    #allocation2 [shape = 'u8[16384]{0}', space=vmem, size = 0x4000, scoped, tag = 'input window, operand 0']
    #allocation3 [shape = 's32[2]{0}', space=sflag, size = 0x8, scoped, tag = 'scoped memory for tpu_custom_call.1']
    #allocation4 [shape = 's32[2]{0}', space=sflag, size = 0x8, scoped, tag = 'scoped memory for tpu_custom_call.1']
    #allocation5 [shape = 'u8[131072]{0}', space=vmem, size = 0x20000, scoped, tag = 'input window, operand 1']
    #allocation6 [shape = 's32[2]{0}', space=sflag, size = 0x8, scoped, tag = 'scoped memory for tpu_custom_call.1']
    #allocation7 [shape = 'u8[16384]{0}', space=vmem, size = 0x4000, scoped, tag = 'input window, operand 2']
    #allocation8 [shape = 'u8[32768]{0}', space=vmem, size = 0x8000, scoped, tag = 'input window, operand 3, single buffered']
    #allocation9 [shape = 's32[1]{0}', space=sflag, size = 0x4, scoped, tag = 'scoped memory for tpu_custom_call.1']
    #allocation10 [shape = 'u8[294912]{0}', space=vmem, size = 0x48000, scoped, tag = 'input window, operand 5, single buffered']
    #allocation11 [shape = 'u8[32768]{0}', space=vmem, size = 0x8000, scoped, tag = 'input window, operand 7, single buffered']
    #allocation12 [shape = 's32[1]{0}', space=sflag, size = 0x4, scoped, tag = 'scoped memory for tpu_custom_call.1']
    #allocation13 [shape = 'u8[131072]{0}', space=vmem, size = 0x20000, scoped, tag = 'output window, operand 0']
    %14 = vsyncpa [#allocation3], 0
    %s15 = scalar_lea.sflag [#allocation3], 1
    %16 = vsyncpa %s15, 0
    %17 = vsyncpa [#allocation6], 0
    %s18 = scalar_lea.sflag [#allocation6], 1
    %19 = vsyncpa %s18, 0
    %20 = vsyncpa [#allocation9], 0
    %21 = vsyncpa [#allocation12], 0
    %22 = vsyncpa [#allocation4], 0
    %s23 = scalar_lea.sflag [#allocation4], 1
    %24 = vsyncpa %s23, 0
    loop: start=0, step=1, limit=6
    $region2: #{tpu_custom_call.1} parent=1 // loop_pre_header
      _
    $region3: #{tpu_custom_call.1} parent=1 // loop_header
      %s26 = sphi 0, %s30
      %p27 = scmp.ge.s32.totalorder %s26, 6
      %s33 = sphi 0, %s45
      %s34 = sphi 0, %s41
      %s35 = sphi 0, %s33
      %s36 = sphi 0, %s34
      %s37 = sphi 0, %s35
      %s38 = sphi 0, %s36
      %s58 = sphi 0, %s60
      %s61 = sphi 0, %s58
      %s62 = sphi 0, %s61
      %s78 = sphi 0, %s62
      %s86 = sphi 0, %s88
      %s89 = sphi 0, %s86
      %s90 = sphi 0, %s89
      %s106 = sphi 0, %s90
      %s122 = sphi 0, %s124
      %s125 = sphi 0, %s122
      %s126 = sphi 0, %s125
      %s142 = sphi 0, %s126
      %s146 = sphi 0, %s146
      %s148 = sphi 0, %s146
      %s149 = sphi 0, %s148
      %s163 = sphi 0, %s149
      %s167 = sphi 0, %s167
      %s169 = sphi 0, %s167
      %s170 = sphi 0, %s169
      %s184 = sphi 0, %s170
      %s188 = sphi 0, %s188
      %s190 = sphi 0, %s188
      %s191 = sphi 0, %s190
      %s205 = sphi 0, %s191
      %s209 = sphi 0, %s209
      %s211 = sphi 0, %s209
      %s212 = sphi 0, %s211
      %s226 = sphi 0, %s212
      %s230 = sphi 0, %s230
      %s232 = sphi 0, %s230
      %s233 = sphi 0, %s232
      %s247 = sphi 0, %s233
      %s251 = sphi 0, %s251
      %s253 = sphi 0, %s251
      %s254 = sphi 0, %s253
      %s268 = sphi 0, %s254
      %s276 = sphi 0, %s278
      %s279 = sphi 0, %s276
      %s280 = sphi 0, %s279
      %s296 = sphi 0, %s280
    $region4: #{tpu_custom_call.1} parent=1 // loop_header_branch
      %29 = sbr.rel (%p27) target = $region8
    $region5: #{tpu_custom_call.1} parent=1 // loop_body
      %s31 = ssub.s32 %s26, 1
      %s32 = ssub.s32 %s26, 2
      %s39 = sadd.s32 1, %s34
      %p40 = scmp.ge.s32.totalorder %s39, 2
      %s41 = scalar_select %p40, 0, %s39
      %s42 = sadd.s32 1, %s33
      %s43 = scalar_select %p40, %s42, %s33
      %p44 = scmp.ge.s32.totalorder %s43, 2
      %s45 = scalar_select %p44, 0, %s43
      %s46 = smul.u32 %s34, 8
      %s47 = ssub.s32 %s46, 1
      %p48 = scmp.gt.s32.totalorder %s47, 0
      %s49 = scalar_select %p48, %s47, 0
      %s50 = smul.u32 %s41, 8
      %s51 = ssub.s32 %s50, 1
      %p52 = scmp.gt.s32.totalorder %s51, 0
      %s53 = scalar_select %p52, %s51, 0
      %s54 = ssub.s32 %s33, %s45
      %s55 = ssub.s32 %s49, %s53
      %s56 = sor.u32 %s54, %s55
      %p57 = scmp.eq.s32.totalorder %s56, 0
      %s59 = sadd.s32 %s58, 1
      %s60 = scalar_select %p57, %s58, %s59
      %p63 = pneg %p57
      %p64 = scmp.eq.s32.totalorder %s26, 3
      %p65 = por %p63, %p64
      %p66 = scmp.ne.s32.totalorder %s58, %s61
      %p67 = scmp.eq.s32.totalorder %s26, 0
      %p68 = por %p66, %p67
      %p69 = scmp.ne.s32.totalorder %s58, %s61
      %p70 = scmp.eq.s32.totalorder %s31, 3
      %p71 = por %p69, %p70
      %p72 = scmp.ne.s32.totalorder %s61, %s62
      %p73 = scmp.eq.s32.totalorder %s31, 0
      %p74 = por %p72, %p73
      %p75 = scmp.ne.s32.totalorder %s61, %s62
      %p76 = scmp.eq.s32.totalorder %s32, 3
      %p77 = por %p75, %p76
      %p79 = scmp.ne.s32.totalorder %s62, %s78
      %p80 = scmp.eq.s32.totalorder %s32, 0
      %p81 = por %p79, %p80
      %s82 = ssub.s32 %s33, %s45
      %s83 = ssub.s32 %s34, %s41
      %s84 = sor.u32 %s82, %s83
      %p85 = scmp.eq.s32.totalorder %s84, 0
      %s87 = sadd.s32 %s86, 1
      %s88 = scalar_select %p85, %s86, %s87
      %p91 = pneg %p85
      %p92 = scmp.eq.s32.totalorder %s26, 3
      %p93 = por %p91, %p92
      %p94 = scmp.ne.s32.totalorder %s86, %s89
      %p95 = scmp.eq.s32.totalorder %s26, 0
      %p96 = por %p94, %p95
      %p97 = scmp.ne.s32.totalorder %s86, %s89
      %p98 = scmp.eq.s32.totalorder %s31, 3
      %p99 = por %p97, %p98
      %p100 = scmp.ne.s32.totalorder %s89, %s90
      %p101 = scmp.eq.s32.totalorder %s31, 0
      %p102 = por %p100, %p101
      %p103 = scmp.ne.s32.totalorder %s89, %s90
      %p104 = scmp.eq.s32.totalorder %s32, 3
      %p105 = por %p103, %p104
      %p107 = scmp.ne.s32.totalorder %s90, %s106
      %p108 = scmp.eq.s32.totalorder %s32, 0
      %p109 = por %p107, %p108
      %s110 = sadd.s32 %s34, 1
      %s111 = smul.u32 %s110, 8
      %p112 = scmp.lt.s32.totalorder %s111, 15
      %s113 = scalar_select %p112, %s111, 15
      %s114 = sadd.s32 %s41, 1
      %s115 = smul.u32 %s114, 8
      %p116 = scmp.lt.s32.totalorder %s115, 15
      %s117 = scalar_select %p116, %s115, 15
      %s118 = ssub.s32 %s33, %s45
      %s119 = ssub.s32 %s113, %s117
      %s120 = sor.u32 %s118, %s119
      %p121 = scmp.eq.s32.totalorder %s120, 0
      %s123 = sadd.s32 %s122, 1
      %s124 = scalar_select %p121, %s122, %s123
      %p127 = pneg %p121
      %p128 = scmp.eq.s32.totalorder %s26, 3
      %p129 = por %p127, %p128
      %p130 = scmp.ne.s32.totalorder %s122, %s125
      %p131 = scmp.eq.s32.totalorder %s26, 0
      %p132 = por %p130, %p131
      %p133 = scmp.ne.s32.totalorder %s122, %s125
      %p134 = scmp.eq.s32.totalorder %s31, 3
      %p135 = por %p133, %p134
      %p136 = scmp.ne.s32.totalorder %s125, %s126
      %p137 = scmp.eq.s32.totalorder %s31, 0
      %p138 = por %p136, %p137
      %p139 = scmp.ne.s32.totalorder %s125, %s126
      %p140 = scmp.eq.s32.totalorder %s32, 3
      %p141 = por %p139, %p140
      %p143 = scmp.ne.s32.totalorder %s126, %s142
      %p144 = scmp.eq.s32.totalorder %s32, 0
      %p145 = por %p143, %p144
      %s147 = sadd.s32 %s146, 1
      %p150 = scmp.eq.s32.totalorder %s26, 3
      %p151 = scmp.ne.s32.totalorder %s146, %s148
      %p152 = scmp.eq.s32.totalorder %s26, 0
      %p153 = por %p151, %p152
      %p154 = scmp.ne.s32.totalorder %s146, %s148
      %p155 = scmp.eq.s32.totalorder %s31, 3
      %p156 = por %p154, %p155
      %p157 = scmp.ne.s32.totalorder %s148, %s149
      %p158 = scmp.eq.s32.totalorder %s31, 0
      %p159 = por %p157, %p158
      %p160 = scmp.ne.s32.totalorder %s148, %s149
      %p161 = scmp.eq.s32.totalorder %s32, 3
      %p162 = por %p160, %p161
      %p164 = scmp.ne.s32.totalorder %s149, %s163
      %p165 = scmp.eq.s32.totalorder %s32, 0
      %p166 = por %p164, %p165
      %s168 = sadd.s32 %s167, 1
      %p171 = scmp.eq.s32.totalorder %s26, 3
      %p172 = scmp.ne.s32.totalorder %s167, %s169
      %p173 = scmp.eq.s32.totalorder %s26, 0
      %p174 = por %p172, %p173
      %p175 = scmp.ne.s32.totalorder %s167, %s169
      %p176 = scmp.eq.s32.totalorder %s31, 3
      %p177 = por %p175, %p176
      %p178 = scmp.ne.s32.totalorder %s169, %s170
      %p179 = scmp.eq.s32.totalorder %s31, 0
      %p180 = por %p178, %p179
      %p181 = scmp.ne.s32.totalorder %s169, %s170
      %p182 = scmp.eq.s32.totalorder %s32, 3
      %p183 = por %p181, %p182
      %p185 = scmp.ne.s32.totalorder %s170, %s184
      %p186 = scmp.eq.s32.totalorder %s32, 0
      %p187 = por %p185, %p186
      %s189 = sadd.s32 %s188, 1
      %p192 = scmp.eq.s32.totalorder %s26, 3
      %p193 = scmp.ne.s32.totalorder %s188, %s190
      %p194 = scmp.eq.s32.totalorder %s26, 0
      %p195 = por %p193, %p194
      %p196 = scmp.ne.s32.totalorder %s188, %s190
      %p197 = scmp.eq.s32.totalorder %s31, 3
      %p198 = por %p196, %p197
      %p199 = scmp.ne.s32.totalorder %s190, %s191
      %p200 = scmp.eq.s32.totalorder %s31, 0
      %p201 = por %p199, %p200
      %p202 = scmp.ne.s32.totalorder %s190, %s191
      %p203 = scmp.eq.s32.totalorder %s32, 3
      %p204 = por %p202, %p203
      %p206 = scmp.ne.s32.totalorder %s191, %s205
      %p207 = scmp.eq.s32.totalorder %s32, 0
      %p208 = por %p206, %p207
      %s210 = sadd.s32 %s209, 1
      %p213 = scmp.eq.s32.totalorder %s26, 3
      %p214 = scmp.ne.s32.totalorder %s209, %s211
      %p215 = scmp.eq.s32.totalorder %s26, 0
      %p216 = por %p214, %p215
      %p217 = scmp.ne.s32.totalorder %s209, %s211
      %p218 = scmp.eq.s32.totalorder %s31, 3
      %p219 = por %p217, %p218
      %p220 = scmp.ne.s32.totalorder %s211, %s212
      %p221 = scmp.eq.s32.totalorder %s31, 0
      %p222 = por %p220, %p221
      %p223 = scmp.ne.s32.totalorder %s211, %s212
      %p224 = scmp.eq.s32.totalorder %s32, 3
      %p225 = por %p223, %p224
      %p227 = scmp.ne.s32.totalorder %s212, %s226
      %p228 = scmp.eq.s32.totalorder %s32, 0
      %p229 = por %p227, %p228
      %s231 = sadd.s32 %s230, 1
      %p234 = scmp.eq.s32.totalorder %s26, 3
      %p235 = scmp.ne.s32.totalorder %s230, %s232
      %p236 = scmp.eq.s32.totalorder %s26, 0
      %p237 = por %p235, %p236
      %p238 = scmp.ne.s32.totalorder %s230, %s232
      %p239 = scmp.eq.s32.totalorder %s31, 3
      %p240 = por %p238, %p239
      %p241 = scmp.ne.s32.totalorder %s232, %s233
      %p242 = scmp.eq.s32.totalorder %s31, 0
      %p243 = por %p241, %p242
      %p244 = scmp.ne.s32.totalorder %s232, %s233
      %p245 = scmp.eq.s32.totalorder %s32, 3
      %p246 = por %p244, %p245
      %p248 = scmp.ne.s32.totalorder %s233, %s247
      %p249 = scmp.eq.s32.totalorder %s32, 0
      %p250 = por %p248, %p249
      %s252 = sadd.s32 %s251, 1
      %p255 = scmp.eq.s32.totalorder %s26, 3
      %p256 = scmp.ne.s32.totalorder %s251, %s253
      %p257 = scmp.eq.s32.totalorder %s26, 0
      %p258 = por %p256, %p257
      %p259 = scmp.ne.s32.totalorder %s251, %s253
      %p260 = scmp.eq.s32.totalorder %s31, 3
      %p261 = por %p259, %p260
      %p262 = scmp.ne.s32.totalorder %s253, %s254
      %p263 = scmp.eq.s32.totalorder %s31, 0
      %p264 = por %p262, %p263
      %p265 = scmp.ne.s32.totalorder %s253, %s254
      %p266 = scmp.eq.s32.totalorder %s32, 3
      %p267 = por %p265, %p266
      %p269 = scmp.ne.s32.totalorder %s254, %s268
      %p270 = scmp.eq.s32.totalorder %s32, 0
      %p271 = por %p269, %p270
      %s272 = ssub.s32 %s33, %s45
      %s273 = ssub.s32 %s34, %s41
      %s274 = sor.u32 %s272, %s273
      %p275 = scmp.eq.s32.totalorder %s274, 0
      %s277 = sadd.s32 %s276, 1
      %s278 = scalar_select %p275, %s276, %s277
      %p281 = pneg %p275
      %p282 = scmp.eq.s32.totalorder %s26, 3
      %p283 = por %p281, %p282
      %p284 = scmp.ne.s32.totalorder %s276, %s279
      %p285 = scmp.eq.s32.totalorder %s26, 0
      %p286 = por %p284, %p285
      %p287 = scmp.ne.s32.totalorder %s276, %s279
      %p288 = scmp.eq.s32.totalorder %s31, 3
      %p289 = por %p287, %p288
      %p290 = scmp.ne.s32.totalorder %s279, %s280
      %p291 = scmp.eq.s32.totalorder %s31, 0
      %p292 = por %p290, %p291
      %p293 = scmp.ne.s32.totalorder %s279, %s280
      %p294 = scmp.eq.s32.totalorder %s32, 3
      %p295 = por %p293, %p294
      %p297 = scmp.ne.s32.totalorder %s280, %s296
      %p298 = scmp.eq.s32.totalorder %s32, 0
      %p299 = por %p297, %p298
      %p300 = scmp.le.s32.totalorder 1, %s26
      %p301 = scmp.lt.s32.totalorder %s26, 5
      %p302 = pnand %p300, %p301
      %p303 = pneg %p302
      // Predicated region
      $region9: #{tpu_custom_call.1} parent=5 // pred_check
        _
      $region10: #{tpu_custom_call.1} parent=5 // pred_check_branch
        %305 = sbr.rel (%p302) target = $region12
      $region11: #{tpu_custom_call.1} parent=5 // pred_region
        %s306 = ssub.s32 %s26, 1
        // Predicated region
        $region13: #{tpu_custom_call.1} parent=11 // pred_check
          %p307 = pneg %p159
        $region14: #{tpu_custom_call.1} parent=11 // pred_check_branch
          %309 = sbr.rel (%p307) target = $region16
        $region15: #{tpu_custom_call.1} parent=11 // pred_region
          %311 = vsyncadd [#allocation9], 0
          %s312 = sshll.u32 %s3, 4
          %s313 = int_to_ptr.hbm [resolvable:$true] %s312
          %s314 = sshll.u32 [#allocation8], 4
          %s315 = int_to_ptr.vmem [resolvable:$true] %s314
          %320 = dma.hbm_to_vmem [thread:$0]  %s313, 1024, %s315, [#allocation9], 64, 64, 4
        $region16: #{tpu_custom_call.1} parent=11 // pred_fallthru
          _
        // Predicated region
        $region17: #{tpu_custom_call.1} parent=11 // pred_check
          %p321 = pneg %p180
        $region18: #{tpu_custom_call.1} parent=11 // pred_check_branch
          %323 = sbr.rel (%p321) target = $region20
        $region19: #{tpu_custom_call.1} parent=11 // pred_region
          _
        $region20: #{tpu_custom_call.1} parent=11 // pred_fallthru
          _
        // Predicated region
        $region21: #{tpu_custom_call.1} parent=11 // pred_check
          %p324 = pneg %p201
        $region22: #{tpu_custom_call.1} parent=11 // pred_check_branch
          %326 = sbr.rel (%p324) target = $region24
        $region23: #{tpu_custom_call.1} parent=11 // pred_region
          %328 = vsyncadd [#allocation9], 0
          %s329 = sshll.u32 %s5, 4
          %s330 = int_to_ptr.hbm [resolvable:$true] %s329
          %s331 = sshll.u32 [#allocation10], 4
          %s332 = int_to_ptr.vmem [resolvable:$true] %s331
          %337 = dma.hbm_to_vmem [thread:$0]  %s330, 9216, %s332, [#allocation9], 64, 64, 4
        $region24: #{tpu_custom_call.1} parent=11 // pred_fallthru
          _
        // Predicated region
        $region25: #{tpu_custom_call.1} parent=11 // pred_check
          %p338 = pneg %p222
        $region26: #{tpu_custom_call.1} parent=11 // pred_check_branch
          %340 = sbr.rel (%p338) target = $region28
        $region27: #{tpu_custom_call.1} parent=11 // pred_region
          _
        $region28: #{tpu_custom_call.1} parent=11 // pred_fallthru
          _
        // Predicated region
        $region29: #{tpu_custom_call.1} parent=11 // pred_check
          %p341 = pneg %p243
        $region30: #{tpu_custom_call.1} parent=11 // pred_check_branch
          %343 = sbr.rel (%p341) target = $region32
        $region31: #{tpu_custom_call.1} parent=11 // pred_region
          %345 = vsyncadd [#allocation12], 0
          %s346 = sshll.u32 %s7, 4
          %s347 = int_to_ptr.hbm [resolvable:$true] %s346
          %s348 = sshll.u32 [#allocation11], 4
          %s349 = int_to_ptr.vmem [resolvable:$true] %s348
          %354 = dma.hbm_to_vmem [thread:$0]  %s347, 1024, %s349, [#allocation12], 64, 64, 4
        $region32: #{tpu_custom_call.1} parent=11 // pred_fallthru
          _
        // Predicated region
        $region33: #{tpu_custom_call.1} parent=11 // pred_check
          %p355 = pneg %p264
        $region34: #{tpu_custom_call.1} parent=11 // pred_check_branch
          %357 = sbr.rel (%p355) target = $region36
        $region35: #{tpu_custom_call.1} parent=11 // pred_region
          _
        $region36: #{tpu_custom_call.1} parent=11 // pred_fallthru
          _
      $region12: #{tpu_custom_call.1} parent=5 // pred_fallthru
        _
      %p358 = scmp.lt.s32.totalorder %s26, 4
      // Predicated region
      $region37: #{tpu_custom_call.1} parent=5 // pred_check
        %p359 = pneg %p358
      $region38: #{tpu_custom_call.1} parent=5 // pred_check_branch
        %361 = sbr.rel (%p359) target = $region40
      $region39: #{tpu_custom_call.1} parent=5 // pred_region
        // Predicated region
        $region41: #{tpu_custom_call.1} parent=39 // pred_check
          %p362 = pneg %p68
        $region42: #{tpu_custom_call.1} parent=39 // pred_check_branch
          %364 = sbr.rel (%p362) target = $region44
        $region43: #{tpu_custom_call.1} parent=39 // pred_region
          %s365 = sand.u32 %s58, 1
          %s366 = scalar_lea.sflag [#allocation3], %s365
          %s367 = sand.u32 %s58, 1
          %s368 = smul.addr %s367, 16
          %s369 = scalar_lea.vmem [#allocation2], %s368
          %s370 = smul.u32 %s34, 8
          %s371 = ssub.s32 %s370, 1
          %p372 = scmp.gt.s32.totalorder %s371, 0
          %s373 = scalar_select %p372, %s371, 0
          %375 = vsyncadd %s366, 0
          %s376 = smul.addr %s373, 2
          %s377 = smul.addr %s33, 32
          %s378 = sadd.s32 %s376, %s377
          %s379 = smul.addr %s378, 8
          %s380 = scalar_lea.hbm %s0, %s379
          %s381 = sshll.u32 %s380, 4
          %s382 = int_to_ptr.hbm [resolvable:$true] %s381
          %s383 = sshll.u32 %s369, 4
          %s384 = int_to_ptr.vmem [resolvable:$true] %s383
          %389 = dma.hbm_to_vmem [thread:$0]  %s382, 256, %s384, %s366, 128, 128, 8
        $region44: #{tpu_custom_call.1} parent=39 // pred_fallthru
          _
        // Predicated region
        $region45: #{tpu_custom_call.1} parent=39 // pred_check
          %p390 = pneg %p96
        $region46: #{tpu_custom_call.1} parent=39 // pred_check_branch
          %392 = sbr.rel (%p390) target = $region48
        $region47: #{tpu_custom_call.1} parent=39 // pred_region
          %s393 = sand.u32 %s26, 1
          %s394 = scalar_lea.sflag [#allocation6], %s393
          %s395 = sand.u32 %s86, 1
          %s396 = smul.addr %s395, 128
          %s397 = scalar_lea.vmem [#allocation5], %s396
          %s398 = smul.u32 8, %s34
          %400 = vsyncadd %s394, 0
          %s401 = smul.addr %s398, 2
          %s402 = smul.addr %s33, 32
          %s403 = sadd.s32 %s401, %s402
          %s404 = smul.addr %s403, 8
          %s405 = scalar_lea.hbm %s1, %s404
          %s406 = sshll.u32 %s405, 4
          %s407 = int_to_ptr.hbm [resolvable:$true] %s406
          %s408 = sshll.u32 %s397, 4
          %s409 = int_to_ptr.vmem [resolvable:$true] %s408
          %414 = dma.hbm_to_vmem [thread:$0]  %s407, 2048, %s409, %s394, 128, 128, 8
        $region48: #{tpu_custom_call.1} parent=39 // pred_fallthru
          _
        // Predicated region
        $region49: #{tpu_custom_call.1} parent=39 // pred_check
          %p415 = pneg %p132
        $region50: #{tpu_custom_call.1} parent=39 // pred_check_branch
          %417 = sbr.rel (%p415) target = $region52
        $region51: #{tpu_custom_call.1} parent=39 // pred_region
          %s418 = sand.u32 %s26, 1
          %s419 = scalar_lea.sflag [#allocation6], %s418
          %s420 = sand.u32 %s122, 1
          %s421 = smul.addr %s420, 16
          %s422 = scalar_lea.vmem [#allocation7], %s421
          %s423 = sadd.s32 %s34, 1
          %s424 = smul.u32 %s423, 8
          %p425 = scmp.lt.s32.totalorder %s424, 15
          %s426 = scalar_select %p425, %s424, 15
          %428 = vsyncadd %s419, 0
          %s429 = smul.addr %s426, 2
          %s430 = smul.addr %s33, 32
          %s431 = sadd.s32 %s429, %s430
          %s432 = smul.addr %s431, 8
          %s433 = scalar_lea.hbm %s2, %s432
          %s434 = sshll.u32 %s433, 4
          %s435 = int_to_ptr.hbm [resolvable:$true] %s434
          %s436 = sshll.u32 %s422, 4
          %s437 = int_to_ptr.vmem [resolvable:$true] %s436
          %442 = dma.hbm_to_vmem [thread:$0]  %s435, 256, %s437, %s419, 128, 128, 8
        $region52: #{tpu_custom_call.1} parent=39 // pred_fallthru
          _
      $region40: #{tpu_custom_call.1} parent=5 // pred_fallthru
        _
      %p443 = scmp.le.s32.totalorder 1, %s26
      %p444 = scmp.lt.s32.totalorder %s26, 5
      %p445 = pnand %p443, %p444
      %p446 = pneg %p445
      // Predicated region
      $region53: #{tpu_custom_call.1} parent=5 // pred_check
        _
      $region54: #{tpu_custom_call.1} parent=5 // pred_check_branch
        %448 = sbr.rel (%p445) target = $region56
      $region55: #{tpu_custom_call.1} parent=5 // pred_region
        %s449 = ssub.s32 %s26, 1
        %s450 = sand.u32 %s61, 1
        %s451 = scalar_lea.sflag [#allocation3], %s450
        %s452 = sand.u32 %s61, 1
        %s453 = smul.addr %s452, 16
        %s454 = scalar_lea.vmem [#allocation2], %s453
        // Predicated region
        $region57: #{tpu_custom_call.1} parent=55 // pred_check
          %p455 = pneg %p74
        $region58: #{tpu_custom_call.1} parent=55 // pred_check_branch
          %457 = sbr.rel (%p455) target = $region60
        $region59: #{tpu_custom_call.1} parent=55 // pred_region
          %459 = dma.done %s451, 256
        $region60: #{tpu_custom_call.1} parent=55 // pred_fallthru
          _
        %s460 = sand.u32 %s31, 1
        %s461 = scalar_lea.sflag [#allocation6], %s460
        %s462 = sand.u32 %s89, 1
        %s463 = smul.addr %s462, 128
        %s464 = scalar_lea.vmem [#allocation5], %s463
        // Predicated region
        $region61: #{tpu_custom_call.1} parent=55 // pred_check
          %p465 = pneg %p102
        $region62: #{tpu_custom_call.1} parent=55 // pred_check_branch
          %467 = sbr.rel (%p465) target = $region64
        $region63: #{tpu_custom_call.1} parent=55 // pred_region
          %469 = dma.done %s461, 2048
        $region64: #{tpu_custom_call.1} parent=55 // pred_fallthru
          _
        %s470 = sand.u32 %s31, 1
        %s471 = scalar_lea.sflag [#allocation6], %s470
        %s472 = sand.u32 %s125, 1
        %s473 = smul.addr %s472, 16
        %s474 = scalar_lea.vmem [#allocation7], %s473
        // Predicated region
        $region65: #{tpu_custom_call.1} parent=55 // pred_check
          %p475 = pneg %p138
        $region66: #{tpu_custom_call.1} parent=55 // pred_check_branch
          %477 = sbr.rel (%p475) target = $region68
        $region67: #{tpu_custom_call.1} parent=55 // pred_region
          %479 = dma.done %s471, 256
        $region68: #{tpu_custom_call.1} parent=55 // pred_fallthru
          _
        // Predicated region
        $region69: #{tpu_custom_call.1} parent=55 // pred_check
          %p480 = pneg %p159
        $region70: #{tpu_custom_call.1} parent=55 // pred_check_branch
          %482 = sbr.rel (%p480) target = $region72
        $region71: #{tpu_custom_call.1} parent=55 // pred_region
          %484 = dma.done [#allocation9], 1024
        $region72: #{tpu_custom_call.1} parent=55 // pred_fallthru
          _
        // Predicated region
        $region73: #{tpu_custom_call.1} parent=55 // pred_check
          %p485 = pneg %p201
        $region74: #{tpu_custom_call.1} parent=55 // pred_check_branch
          %487 = sbr.rel (%p485) target = $region76
        $region75: #{tpu_custom_call.1} parent=55 // pred_region
          %489 = dma.done [#allocation9], 9216
        $region76: #{tpu_custom_call.1} parent=55 // pred_fallthru
          _
        // Predicated region
        $region77: #{tpu_custom_call.1} parent=55 // pred_check
          %p490 = pneg %p243
        $region78: #{tpu_custom_call.1} parent=55 // pred_check_branch
          %492 = sbr.rel (%p490) target = $region80
        $region79: #{tpu_custom_call.1} parent=55 // pred_region
          %494 = dma.done [#allocation12], 1024
        $region80: #{tpu_custom_call.1} parent=55 // pred_fallthru
          _
        %s495 = sand.u32 %s61, 1
        %s496 = scalar_lea.sflag [#allocation3], %s495
        %s497 = sand.u32 %s61, 1
        %s498 = smul.addr %s497, 16
        %s499 = scalar_lea.vmem [#allocation2], %s498
        %p500 = pneg %p74
        %p501 = pneg %p71
        %s502 = sand.u32 %s31, 1
        %s503 = scalar_lea.sflag [#allocation6], %s502
        %s504 = sand.u32 %s89, 1
        %s505 = smul.addr %s504, 128
        %s506 = scalar_lea.vmem [#allocation5], %s505
        %p507 = pneg %p102
        %p508 = pneg %p99
        %s509 = sand.u32 %s31, 1
        %s510 = scalar_lea.sflag [#allocation6], %s509
        %s511 = sand.u32 %s125, 1
        %s512 = smul.addr %s511, 16
        %s513 = scalar_lea.vmem [#allocation7], %s512
        %p514 = pneg %p138
        %p515 = pneg %p135
        %p516 = pneg %p159
        %p517 = pneg %p156
        %p518 = pneg %p180
        %p519 = pneg %p177
        %p520 = pneg %p201
        %p521 = pneg %p198
        %p522 = pneg %p222
        %p523 = pneg %p219
        %p524 = pneg %p243
        %p525 = pneg %p240
        %p526 = pneg %p264
        %p527 = pneg %p261
        %p528 = pneg %p292
        %p529 = pneg %p289
        %s530 = sand.u32 %s279, 1
        %s531 = scalar_lea.sflag [#allocation4], %s530
        %s532 = sand.u32 %s279, 1
        %s533 = smul.addr %s532, 128
        %s534 = scalar_lea.vmem [#allocation13], %s533
        %s535 = smul.u32 %s36, 8
        %s536 = ssub.s32 %s535, 1
        %p537 = scmp.gt.s32.totalorder %s536, 0
        %s538 = scalar_select %p537, %s536, 0
        %s539 = smul.u32 8, %s36
        %s540 = sadd.s32 %s36, 1
        %s541 = smul.u32 %s540, 8
        %p542 = scmp.lt.s32.totalorder %s541, 15
        %s543 = scalar_select %p542, %s541, 15
        %s544 = smul.u32 8, %s36
        %v545 = vld [vmem:[%s454] sm:$0xff]
        %v546 = vld [vmem:[%s454 + $0x8] sm:$0xff]
        %v547 = vld [vmem:[%s464] sm:$0xff]
        %v548 = vld [vmem:[%s464 + $0x8] sm:$0xff]
        %v549 = vld [vmem:[%s464 + $0x10] sm:$0xff]
        %v550 = vld [vmem:[%s464 + $0x18] sm:$0xff]
        %v551 = vld [vmem:[%s464 + $0x20] sm:$0xff]
        %v552 = vld [vmem:[%s464 + $0x28] sm:$0xff]
        %v553 = vld [vmem:[%s464 + $0x30] sm:$0xff]
        %v554 = vld [vmem:[%s464 + $0x38] sm:$0xff]
        %v555 = vld [vmem:[%s464 + $0x40] sm:$0xff]
        %v556 = vld [vmem:[%s464 + $0x48] sm:$0xff]
        %v557 = vld [vmem:[%s464 + $0x50] sm:$0xff]
        %v558 = vld [vmem:[%s464 + $0x58] sm:$0xff]
        %v559 = vld [vmem:[%s464 + $0x60] sm:$0xff]
        %v560 = vld [vmem:[%s464 + $0x68] sm:$0xff]
        %v561 = vld [vmem:[%s464 + $0x70] sm:$0xff]
        %v562 = vld [vmem:[%s464 + $0x78] sm:$0xff]
        %v563 = vld [vmem:[%s474] sm:$0xff]
        %v564 = vld [vmem:[%s474 + $0x8] sm:$0xff]
        %v565 = vpack.c.bf16 %v546, %v545
        %v566 = vpack.c.bf16 %v548, %v547
        %v567 = vpack.c.bf16 %v550, %v549
        %v568 = vpack.c.bf16 %v552, %v551
        %v569 = vpack.c.bf16 %v554, %v553
        %v570 = vpack.c.bf16 %v556, %v555
        %v571 = vpack.c.bf16 %v558, %v557
        %v572 = vpack.c.bf16 %v560, %v559
        %v573 = vpack.c.bf16 %v562, %v561
        %v574 = vpack.c.bf16 %v564, %v563
        %v575 = vld [vmem:[#allocation8] sm:$0xf]
        %v576 = vld [vmem:[#allocation8 + $0x4] sm:$0xf]
        %v577 = vld [vmem:[#allocation8 + $0x8] sm:$0xf]
        %v578 = vld [vmem:[#allocation8 + $0xc] sm:$0xf]
        %v579 = vld [vmem:[#allocation8 + $0x10] sm:$0xf]
        %v580 = vld [vmem:[#allocation8 + $0x14] sm:$0xf]
        %v581 = vld [vmem:[#allocation8 + $0x18] sm:$0xf]
        %v582 = vld [vmem:[#allocation8 + $0x1c] sm:$0xf]
        %v583 = vld [vmem:[#allocation8 + $0x20] sm:$0xf]
        %v584 = vld [vmem:[#allocation8 + $0x24] sm:$0xf]
        %v585 = vld [vmem:[#allocation8 + $0x28] sm:$0xf]
        %v586 = vld [vmem:[#allocation8 + $0x2c] sm:$0xf]
        %v587 = vld [vmem:[#allocation8 + $0x30] sm:$0xf]
        %v588 = vld [vmem:[#allocation8 + $0x34] sm:$0xf]
        %v589 = vld [vmem:[#allocation8 + $0x38] sm:$0xf]
        %v590 = vld [vmem:[#allocation8 + $0x3c] sm:$0xf]
        %v591 = vld [vmem:[%s4] sm:$0x1]
        %v593 = vperm.slane %v591, 0
        %v611 = vunpack.c.l.b16 %v575
        %v612 = vunpack.c.l.b16 %v576
        %v613 = vunpack.c.l.b16 %v577
        %v614 = vunpack.c.l.b16 %v578
        %v615 = vunpack.c.l.b16 %v579
        %v616 = vunpack.c.l.b16 %v580
        %v617 = vunpack.c.l.b16 %v581
        %v618 = vunpack.c.l.b16 %v582
        %v619 = vunpack.c.l.b16 %v583
        %v620 = vunpack.c.l.b16 %v584
        %v621 = vunpack.c.l.b16 %v585
        %v622 = vunpack.c.l.b16 %v586
        %v623 = vunpack.c.l.b16 %v587
        %v624 = vunpack.c.l.b16 %v588
        %v625 = vunpack.c.l.b16 %v589
        %v626 = vunpack.c.l.b16 %v590
        %v627 = vpack.c.b16 %v612, %v611
        %v628 = vpack.c.b16 %v614, %v613
        %v629 = vpack.c.b16 %v616, %v615
        %v630 = vpack.c.b16 %v618, %v617
        %v631 = vpack.c.b16 %v620, %v619
        %v632 = vpack.c.b16 %v622, %v621
        %v633 = vpack.c.b16 %v624, %v623
        %v634 = vpack.c.b16 %v626, %v625
        %643 = vmatpush.bf16.msra.mxu0 %v634
        %644 = vmatpush.bf16.msra.mxu0 %v633
        %645 = vmatpush.bf16.msra.mxu0 %v632
        %646 = vmatpush.bf16.msra.mxu0 %v631
        %647 = vmatpush.bf16.msra.mxu0 %v630
        %648 = vmatpush.bf16.msra.mxu0 %v629
        %649 = vmatpush.bf16.msra.mxu0 %v628
        %650 = vmatpush.bf16.msra.mxu0 %v627
        %651 = vmatmul.bf16.gmra.mxu0 %v565
        %v652 = vpop.f32.mrf.mxu0
        %v653 = vadd.f32 %v593, %v652
        %v654 = vpop.f32.mrf.mxu0
        %v655 = vadd.f32 %v593, %v654
        %656 = vmatmul.bf16.gmra.mxu0 %v566
        %v657 = vpop.f32.mrf.mxu0
        %v658 = vadd.f32 %v593, %v657
        %v659 = vpop.f32.mrf.mxu0
        %v660 = vadd.f32 %v593, %v659
        %661 = vmatmul.bf16.gmra.mxu0 %v567
        %v662 = vpop.f32.mrf.mxu0
        %v663 = vadd.f32 %v593, %v662
        %v664 = vpop.f32.mrf.mxu0
        %v665 = vadd.f32 %v593, %v664
        %666 = vmatmul.bf16.gmra.mxu0 %v568
        %v667 = vpop.f32.mrf.mxu0
        %v668 = vadd.f32 %v593, %v667
        %v669 = vpop.f32.mrf.mxu0
        %v670 = vadd.f32 %v593, %v669
        %671 = vmatmul.bf16.gmra.mxu0 %v569
        %v672 = vpop.f32.mrf.mxu0
        %v673 = vadd.f32 %v593, %v672
        %v674 = vpop.f32.mrf.mxu0
        %v675 = vadd.f32 %v593, %v674
        %676 = vmatmul.bf16.gmra.mxu0 %v570
        %v677 = vpop.f32.mrf.mxu0
        %v678 = vadd.f32 %v593, %v677
        %v679 = vpop.f32.mrf.mxu0
        %v680 = vadd.f32 %v593, %v679
        %681 = vmatmul.bf16.gmra.mxu0 %v571
        %v682 = vpop.f32.mrf.mxu0
        %v683 = vadd.f32 %v593, %v682
        %v684 = vpop.f32.mrf.mxu0
        %v685 = vadd.f32 %v593, %v684
        %686 = vmatmul.bf16.gmra.mxu0 %v572
        %v687 = vpop.f32.mrf.mxu0
        %v688 = vadd.f32 %v593, %v687
        %v689 = vpop.f32.mrf.mxu0
        %v690 = vadd.f32 %v593, %v689
        %691 = vmatmul.bf16.gmra.mxu0 %v573
        %v692 = vpop.f32.mrf.mxu0
        %v693 = vadd.f32 %v593, %v692
        %v694 = vpop.f32.mrf.mxu0
        %v695 = vadd.f32 %v593, %v694
        %696 = vmatmul.bf16.gmra.mxu0 %v574
        %v697 = vpop.f32.mrf.mxu0
        %v698 = vadd.f32 %v593, %v697
        %v699 = vpop.f32.mrf.mxu0
        %v700 = vadd.f32 %v593, %v699
        %701 = vdwg.mxu0
        %v702 = vmax.f32 %v653, 0.0
        %v703 = vmax.f32 %v655, 0.0
        %v704 = vmax.f32 %v658, 0.0
        %v705 = vmax.f32 %v660, 0.0
        %v706 = vmax.f32 %v663, 0.0
        %v707 = vmax.f32 %v665, 0.0
        %v708 = vmax.f32 %v668, 0.0
        %v709 = vmax.f32 %v670, 0.0
        %v710 = vmax.f32 %v673, 0.0
        %v711 = vmax.f32 %v675, 0.0
        %v712 = vmax.f32 %v678, 0.0
        %v713 = vmax.f32 %v680, 0.0
        %v714 = vmax.f32 %v683, 0.0
        %v715 = vmax.f32 %v685, 0.0
        %v716 = vmax.f32 %v688, 0.0
        %v717 = vmax.f32 %v690, 0.0
        %v718 = vmax.f32 %v693, 0.0
        %v719 = vmax.f32 %v695, 0.0
        %v720 = vmax.f32 %v698, 0.0
        %v721 = vmax.f32 %v700, 0.0
        %p722 = scmp.eq.s32.totalorder %s36, 0
        %s723 = scalar_select %p722, 1, 0
        %v724 = vstv %s723
        %vm725 = vcmp.eq.s32.totalorder %v724, 1
        %p726 = scmp.eq.s32.totalorder %s36, 1
        %s727 = scalar_select %p726, 1, 0
        %v728 = vstv %s727
        %vm729 = vcmp.eq.s32.totalorder %v728, 1
        %v730 = vsel %vm725, 1, 0
        %v731 = vsel %vm729, 1, 0
        %vm732 = vcmp.eq.s32.totalorder %v730, 1
        %vm733 = vcmp.eq.s32.totalorder %v731, 1
        %v734 = vsel %vm732, 0.0, %v702
        %v735 = vsel %vm732, 0.0, %v703
        %v736 = vsel 0, 0.0, %v704
        %v737 = vsel 0, 0.0, %v705
        %v738 = vsel 0, 0.0, %v706
        %v739 = vsel 0, 0.0, %v707
        %v740 = vsel 0, 0.0, %v708
        %v741 = vsel 0, 0.0, %v709
        %v742 = vsel 0, 0.0, %v710
        %v743 = vsel 0, 0.0, %v711
        %v744 = vsel 0, 0.0, %v712
        %v745 = vsel 0, 0.0, %v713
        %v746 = vsel 0, 0.0, %v714
        %v747 = vsel 0, 0.0, %v715
        %v748 = vsel 0, 0.0, %v716
        %v749 = vsel 0, 0.0, %v717
        %v750 = vsel 0, 0.0, %v718
        %v751 = vsel 0, 0.0, %v719
        %v752 = vsel %vm733, 0.0, %v720
        %v753 = vsel %vm733, 0.0, %v721
        %vm770 = vcmask 1040384
        %v771 = vrot.slane %v734, 7
        %v772 = vrot.slane %v735, 7
        %v773 = vsel %vm770, %v771, %v772
        %v774 = vrot.slane %v736, 7
        %v775 = vrot.slane %v737, 7
        %v776 = vsel %vm770, %v774, %v775
        %v777 = vrot.slane %v738, 7
        %v778 = vrot.slane %v739, 7
        %v779 = vsel %vm770, %v777, %v778
        %v780 = vrot.slane %v740, 7
        %v781 = vrot.slane %v741, 7
        %v782 = vsel %vm770, %v780, %v781
        %v783 = vrot.slane %v742, 7
        %v784 = vrot.slane %v743, 7
        %v785 = vsel %vm770, %v783, %v784
        %v786 = vrot.slane %v744, 7
        %v787 = vrot.slane %v745, 7
        %v788 = vsel %vm770, %v786, %v787
        %v789 = vrot.slane %v746, 7
        %v790 = vrot.slane %v747, 7
        %v791 = vsel %vm770, %v789, %v790
        %v792 = vrot.slane %v748, 7
        %v793 = vrot.slane %v749, 7
        %v794 = vsel %vm770, %v792, %v793
        %v811 = vsel %vm770, 0.0, %v771
        %v812 = vsel %vm770, 0.0, %v774
        %v813 = vsel %vm770, 0.0, %v777
        %v814 = vsel %vm770, 0.0, %v780
        %v815 = vsel %vm770, 0.0, %v783
        %v816 = vsel %vm770, 0.0, %v786
        %v817 = vsel %vm770, 0.0, %v789
        %v818 = vsel %vm770, 0.0, %v792
        %v819 = vpack.c.bf16 %v773, %v811
        %v820 = vpack.c.bf16 %v776, %v812
        %v821 = vpack.c.bf16 %v779, %v813
        %v822 = vpack.c.bf16 %v782, %v814
        %v823 = vpack.c.bf16 %v785, %v815
        %v824 = vpack.c.bf16 %v788, %v816
        %v825 = vpack.c.bf16 %v791, %v817
        %v826 = vpack.c.bf16 %v794, %v818
        %v827 = vld [vmem:[#allocation10] sm:$0xf]
        %v828 = vld [vmem:[#allocation10 + $0x4] sm:$0xf]
        %v829 = vld [vmem:[#allocation10 + $0x8] sm:$0xf]
        %v830 = vld [vmem:[#allocation10 + $0xc] sm:$0xf]
        %v831 = vld [vmem:[#allocation10 + $0x10] sm:$0xf]
        %v832 = vld [vmem:[#allocation10 + $0x14] sm:$0xf]
        %v833 = vld [vmem:[#allocation10 + $0x18] sm:$0xf]
        %v834 = vld [vmem:[#allocation10 + $0x1c] sm:$0xf]
        %v835 = vld [vmem:[#allocation10 + $0x20] sm:$0xf]
        %v836 = vld [vmem:[#allocation10 + $0x24] sm:$0xf]
        %v837 = vld [vmem:[#allocation10 + $0x28] sm:$0xf]
        %v838 = vld [vmem:[#allocation10 + $0x2c] sm:$0xf]
        %v839 = vld [vmem:[#allocation10 + $0x30] sm:$0xf]
        %v840 = vld [vmem:[#allocation10 + $0x34] sm:$0xf]
        %v841 = vld [vmem:[#allocation10 + $0x38] sm:$0xf]
        %v842 = vld [vmem:[#allocation10 + $0x3c] sm:$0xf]
        %v843 = vpack.c.bf16 %v735, %v734
        %v844 = vpack.c.bf16 %v737, %v736
        %v845 = vpack.c.bf16 %v739, %v738
        %v846 = vpack.c.bf16 %v741, %v740
        %v847 = vpack.c.bf16 %v743, %v742
        %v848 = vpack.c.bf16 %v745, %v744
        %v849 = vpack.c.bf16 %v747, %v746
        %v850 = vpack.c.bf16 %v749, %v748
        %s851 = scalar_lea.vmem [#allocation10], 64
        %v852 = vld [vmem:[%s851] sm:$0xf]
        %v853 = vld [vmem:[%s851 + $0x4] sm:$0xf]
        %v854 = vld [vmem:[%s851 + $0x8] sm:$0xf]
        %v855 = vld [vmem:[%s851 + $0xc] sm:$0xf]
        %v856 = vld [vmem:[%s851 + $0x10] sm:$0xf]
        %v857 = vld [vmem:[%s851 + $0x14] sm:$0xf]
        %v858 = vld [vmem:[%s851 + $0x18] sm:$0xf]
        %v859 = vld [vmem:[%s851 + $0x1c] sm:$0xf]
        %v860 = vld [vmem:[%s851 + $0x20] sm:$0xf]
        %v861 = vld [vmem:[%s851 + $0x24] sm:$0xf]
        %v862 = vld [vmem:[%s851 + $0x28] sm:$0xf]
        %v863 = vld [vmem:[%s851 + $0x2c] sm:$0xf]
        %v864 = vld [vmem:[%s851 + $0x30] sm:$0xf]
        %v865 = vld [vmem:[%s851 + $0x34] sm:$0xf]
        %v866 = vld [vmem:[%s851 + $0x38] sm:$0xf]
        %v867 = vld [vmem:[%s851 + $0x3c] sm:$0xf]
        %v884 = vunpack.c.l.b16 %v852
        %v885 = vunpack.c.l.b16 %v853
        %v886 = vunpack.c.l.b16 %v854
        %v887 = vunpack.c.l.b16 %v855
        %v888 = vunpack.c.l.b16 %v856
        %v889 = vunpack.c.l.b16 %v857
        %v890 = vunpack.c.l.b16 %v858
        %v891 = vunpack.c.l.b16 %v859
        %v892 = vunpack.c.l.b16 %v860
        %v893 = vunpack.c.l.b16 %v861
        %v894 = vunpack.c.l.b16 %v862
        %v895 = vunpack.c.l.b16 %v863
        %v896 = vunpack.c.l.b16 %v864
        %v897 = vunpack.c.l.b16 %v865
        %v898 = vunpack.c.l.b16 %v866
        %v899 = vunpack.c.l.b16 %v867
        %v900 = vpack.c.b16 %v885, %v884
        %v901 = vpack.c.b16 %v887, %v886
        %v902 = vpack.c.b16 %v889, %v888
        %v903 = vpack.c.b16 %v891, %v890
        %v904 = vpack.c.b16 %v893, %v892
        %v905 = vpack.c.b16 %v895, %v894
        %v906 = vpack.c.b16 %v897, %v896
        %v907 = vpack.c.b16 %v899, %v898
        %916 = vmatpush.bf16.msra.mxu0 %v907
        %917 = vmatpush.bf16.msra.mxu0 %v906
        %918 = vmatpush.bf16.msra.mxu0 %v905
        %919 = vmatpush.bf16.msra.mxu0 %v904
        %920 = vmatpush.bf16.msra.mxu0 %v903
        %921 = vmatpush.bf16.msra.mxu0 %v902
        %922 = vmatpush.bf16.msra.mxu0 %v901
        %923 = vmatpush.bf16.msra.mxu0 %v900
        %924 = vmatmul.bf16.gmra.mxu0 %v843
        %v925 = vpop.f32.mrf.mxu0
        %v926 = vadd.f32 0.0, %v925
        %v927 = vpop.f32.mrf.mxu0
        %v928 = vadd.f32 0.0, %v927
        %929 = vmatmul.bf16.gmra.mxu0 %v844
        %v930 = vpop.f32.mrf.mxu0
        %v931 = vadd.f32 0.0, %v930
        %v932 = vpop.f32.mrf.mxu0
        %v933 = vadd.f32 0.0, %v932
        %934 = vmatmul.bf16.gmra.mxu0 %v845
        %v935 = vpop.f32.mrf.mxu0
        %v936 = vadd.f32 0.0, %v935
        %v937 = vpop.f32.mrf.mxu0
        %v938 = vadd.f32 0.0, %v937
        %939 = vmatmul.bf16.gmra.mxu0 %v846
        %v940 = vpop.f32.mrf.mxu0
        %v941 = vadd.f32 0.0, %v940
        %v942 = vpop.f32.mrf.mxu0
        %v943 = vadd.f32 0.0, %v942
        %944 = vmatmul.bf16.gmra.mxu0 %v847
        %v945 = vpop.f32.mrf.mxu0
        %v946 = vadd.f32 0.0, %v945
        %v947 = vpop.f32.mrf.mxu0
        %v948 = vadd.f32 0.0, %v947
        %949 = vmatmul.bf16.gmra.mxu0 %v848
        %v950 = vpop.f32.mrf.mxu0
        %v951 = vadd.f32 0.0, %v950
        %v952 = vpop.f32.mrf.mxu0
        %v953 = vadd.f32 0.0, %v952
        %954 = vmatmul.bf16.gmra.mxu0 %v849
        %v955 = vpop.f32.mrf.mxu0
        %v956 = vadd.f32 0.0, %v955
        %v957 = vpop.f32.mrf.mxu0
        %v958 = vadd.f32 0.0, %v957
        %959 = vmatmul.bf16.gmra.mxu0 %v850
        %v960 = vpop.f32.mrf.mxu0
        %v961 = vadd.f32 0.0, %v960
        %v962 = vpop.f32.mrf.mxu0
        %v963 = vadd.f32 0.0, %v962
        %964 = vdwg.mxu0
        %v981 = vunpack.c.l.b16 %v827
        %v982 = vunpack.c.l.b16 %v828
        %v983 = vunpack.c.l.b16 %v829
        %v984 = vunpack.c.l.b16 %v830
        %v985 = vunpack.c.l.b16 %v831
        %v986 = vunpack.c.l.b16 %v832
        %v987 = vunpack.c.l.b16 %v833
        %v988 = vunpack.c.l.b16 %v834
        %v989 = vunpack.c.l.b16 %v835
        %v990 = vunpack.c.l.b16 %v836
        %v991 = vunpack.c.l.b16 %v837
        %v992 = vunpack.c.l.b16 %v838
        %v993 = vunpack.c.l.b16 %v839
        %v994 = vunpack.c.l.b16 %v840
        %v995 = vunpack.c.l.b16 %v841
        %v996 = vunpack.c.l.b16 %v842
        %v997 = vpack.c.b16 %v982, %v981
        %v998 = vpack.c.b16 %v984, %v983
        %v999 = vpack.c.b16 %v986, %v985
        %v1000 = vpack.c.b16 %v988, %v987
        %v1001 = vpack.c.b16 %v990, %v989
        %v1002 = vpack.c.b16 %v992, %v991
        %v1003 = vpack.c.b16 %v994, %v993
        %v1004 = vpack.c.b16 %v996, %v995
        %1013 = vmatpush.bf16.msra.mxu0 %v1004
        %1014 = vmatpush.bf16.msra.mxu0 %v1003
        %1015 = vmatpush.bf16.msra.mxu0 %v1002
        %1016 = vmatpush.bf16.msra.mxu0 %v1001
        %1017 = vmatpush.bf16.msra.mxu0 %v1000
        %1018 = vmatpush.bf16.msra.mxu0 %v999
        %1019 = vmatpush.bf16.msra.mxu0 %v998
        %1020 = vmatpush.bf16.msra.mxu0 %v997
        %1021 = vmatmul.bf16.gmra.mxu0 %v819
        %v1022 = vpop.f32.mrf.mxu0
        %v1023 = vadd.f32 %v926, %v1022
        %v1024 = vpop.f32.mrf.mxu0
        %v1025 = vadd.f32 %v928, %v1024
        %1026 = vmatmul.bf16.gmra.mxu0 %v820
        %v1027 = vpop.f32.mrf.mxu0
        %v1028 = vadd.f32 %v931, %v1027
        %v1029 = vpop.f32.mrf.mxu0
        %v1030 = vadd.f32 %v933, %v1029
        %1031 = vmatmul.bf16.gmra.mxu0 %v821
        %v1032 = vpop.f32.mrf.mxu0
        %v1033 = vadd.f32 %v936, %v1032
        %v1034 = vpop.f32.mrf.mxu0
        %v1035 = vadd.f32 %v938, %v1034
        %1036 = vmatmul.bf16.gmra.mxu0 %v822
        %v1037 = vpop.f32.mrf.mxu0
        %v1038 = vadd.f32 %v941, %v1037
        %v1039 = vpop.f32.mrf.mxu0
        %v1040 = vadd.f32 %v943, %v1039
        %1041 = vmatmul.bf16.gmra.mxu0 %v823
        %v1042 = vpop.f32.mrf.mxu0
        %v1043 = vadd.f32 %v946, %v1042
        %v1044 = vpop.f32.mrf.mxu0
        %v1045 = vadd.f32 %v948, %v1044
        %1046 = vmatmul.bf16.gmra.mxu0 %v824
        %v1047 = vpop.f32.mrf.mxu0
        %v1048 = vadd.f32 %v951, %v1047
        %v1049 = vpop.f32.mrf.mxu0
        %v1050 = vadd.f32 %v953, %v1049
        %1051 = vmatmul.bf16.gmra.mxu0 %v825
        %v1052 = vpop.f32.mrf.mxu0
        %v1053 = vadd.f32 %v956, %v1052
        %v1054 = vpop.f32.mrf.mxu0
        %v1055 = vadd.f32 %v958, %v1054
        %1056 = vmatmul.bf16.gmra.mxu0 %v826
        %v1057 = vpop.f32.mrf.mxu0
        %v1058 = vadd.f32 %v961, %v1057
        %v1059 = vpop.f32.mrf.mxu0
        %v1060 = vadd.f32 %v963, %v1059
        %1061 = vdwg.mxu0
        %vm1062 = vcmask 1046528
        %v1063 = vrot.slane %v734, 1
        %v1064 = vrot.slane %v735, 1
        %v1065 = vsel %vm1062, %v1063, %v1064
        %v1066 = vrot.slane %v736, 1
        %v1067 = vrot.slane %v737, 1
        %v1068 = vsel %vm1062, %v1066, %v1067
        %v1069 = vrot.slane %v738, 1
        %v1070 = vrot.slane %v739, 1
        %v1071 = vsel %vm1062, %v1069, %v1070
        %v1072 = vrot.slane %v740, 1
        %v1073 = vrot.slane %v741, 1
        %v1074 = vsel %vm1062, %v1072, %v1073
        %v1075 = vrot.slane %v742, 1
        %v1076 = vrot.slane %v743, 1
        %v1077 = vsel %vm1062, %v1075, %v1076
        %v1078 = vrot.slane %v744, 1
        %v1079 = vrot.slane %v745, 1
        %v1080 = vsel %vm1062, %v1078, %v1079
        %v1081 = vrot.slane %v746, 1
        %v1082 = vrot.slane %v747, 1
        %v1083 = vsel %vm1062, %v1081, %v1082
        %v1084 = vrot.slane %v748, 1
        %v1085 = vrot.slane %v749, 1
        %v1086 = vsel %vm1062, %v1084, %v1085
        %v1103 = vsel %vm1062, %v1064, 0.0
        %v1104 = vsel %vm1062, %v1067, 0.0
        %v1105 = vsel %vm1062, %v1070, 0.0
        %v1106 = vsel %vm1062, %v1073, 0.0
        %v1107 = vsel %vm1062, %v1076, 0.0
        %v1108 = vsel %vm1062, %v1079, 0.0
        %v1109 = vsel %vm1062, %v1082, 0.0
        %v1110 = vsel %vm1062, %v1085, 0.0
        %v1111 = vpack.c.bf16 %v1103, %v1065
        %v1112 = vpack.c.bf16 %v1104, %v1068
        %v1113 = vpack.c.bf16 %v1105, %v1071
        %v1114 = vpack.c.bf16 %v1106, %v1074
        %v1115 = vpack.c.bf16 %v1107, %v1077
        %v1116 = vpack.c.bf16 %v1108, %v1080
        %v1117 = vpack.c.bf16 %v1109, %v1083
        %v1118 = vpack.c.bf16 %v1110, %v1086
        %s1119 = scalar_lea.vmem [#allocation10], 128
        %v1120 = vld [vmem:[%s1119] sm:$0xf]
        %v1121 = vld [vmem:[%s1119 + $0x4] sm:$0xf]
        %v1122 = vld [vmem:[%s1119 + $0x8] sm:$0xf]
        %v1123 = vld [vmem:[%s1119 + $0xc] sm:$0xf]
        %v1124 = vld [vmem:[%s1119 + $0x10] sm:$0xf]
        %v1125 = vld [vmem:[%s1119 + $0x14] sm:$0xf]
        %v1126 = vld [vmem:[%s1119 + $0x18] sm:$0xf]
        %v1127 = vld [vmem:[%s1119 + $0x1c] sm:$0xf]
        %v1128 = vld [vmem:[%s1119 + $0x20] sm:$0xf]
        %v1129 = vld [vmem:[%s1119 + $0x24] sm:$0xf]
        %v1130 = vld [vmem:[%s1119 + $0x28] sm:$0xf]
        %v1131 = vld [vmem:[%s1119 + $0x2c] sm:$0xf]
        %v1132 = vld [vmem:[%s1119 + $0x30] sm:$0xf]
        %v1133 = vld [vmem:[%s1119 + $0x34] sm:$0xf]
        %v1134 = vld [vmem:[%s1119 + $0x38] sm:$0xf]
        %v1135 = vld [vmem:[%s1119 + $0x3c] sm:$0xf]
        %v1152 = vunpack.c.l.b16 %v1120
        %v1153 = vunpack.c.l.b16 %v1121
        %v1154 = vunpack.c.l.b16 %v1122
        %v1155 = vunpack.c.l.b16 %v1123
        %v1156 = vunpack.c.l.b16 %v1124
        %v1157 = vunpack.c.l.b16 %v1125
        %v1158 = vunpack.c.l.b16 %v1126
        %v1159 = vunpack.c.l.b16 %v1127
        %v1160 = vunpack.c.l.b16 %v1128
        %v1161 = vunpack.c.l.b16 %v1129
        %v1162 = vunpack.c.l.b16 %v1130
        %v1163 = vunpack.c.l.b16 %v1131
        %v1164 = vunpack.c.l.b16 %v1132
        %v1165 = vunpack.c.l.b16 %v1133
        %v1166 = vunpack.c.l.b16 %v1134
        %v1167 = vunpack.c.l.b16 %v1135
        %v1168 = vpack.c.b16 %v1153, %v1152
        %v1169 = vpack.c.b16 %v1155, %v1154
        %v1170 = vpack.c.b16 %v1157, %v1156
        %v1171 = vpack.c.b16 %v1159, %v1158
        %v1172 = vpack.c.b16 %v1161, %v1160
        %v1173 = vpack.c.b16 %v1163, %v1162
        %v1174 = vpack.c.b16 %v1165, %v1164
        %v1175 = vpack.c.b16 %v1167, %v1166
        %1184 = vmatpush.bf16.msra.mxu0 %v1175
        %1185 = vmatpush.bf16.msra.mxu0 %v1174
        %1186 = vmatpush.bf16.msra.mxu0 %v1173
        %1187 = vmatpush.bf16.msra.mxu0 %v1172
        %1188 = vmatpush.bf16.msra.mxu0 %v1171
        %1189 = vmatpush.bf16.msra.mxu0 %v1170
        %1190 = vmatpush.bf16.msra.mxu0 %v1169
        %1191 = vmatpush.bf16.msra.mxu0 %v1168
        %1192 = vmatmul.bf16.gmra.mxu0 %v1111
        %v1193 = vpop.f32.mrf.mxu0
        %v1194 = vadd.f32 0.0, %v1193
        %v1195 = vpop.f32.mrf.mxu0
        %v1196 = vadd.f32 0.0, %v1195
        %1197 = vmatmul.bf16.gmra.mxu0 %v1112
        %v1198 = vpop.f32.mrf.mxu0
        %v1199 = vadd.f32 0.0, %v1198
        %v1200 = vpop.f32.mrf.mxu0
        %v1201 = vadd.f32 0.0, %v1200
        %1202 = vmatmul.bf16.gmra.mxu0 %v1113
        %v1203 = vpop.f32.mrf.mxu0
        %v1204 = vadd.f32 0.0, %v1203
        %v1205 = vpop.f32.mrf.mxu0
        %v1206 = vadd.f32 0.0, %v1205
        %1207 = vmatmul.bf16.gmra.mxu0 %v1114
        %v1208 = vpop.f32.mrf.mxu0
        %v1209 = vadd.f32 0.0, %v1208
        %v1210 = vpop.f32.mrf.mxu0
        %v1211 = vadd.f32 0.0, %v1210
        %1212 = vmatmul.bf16.gmra.mxu0 %v1115
        %v1213 = vpop.f32.mrf.mxu0
        %v1214 = vadd.f32 0.0, %v1213
        %v1215 = vpop.f32.mrf.mxu0
        %v1216 = vadd.f32 0.0, %v1215
        %1217 = vmatmul.bf16.gmra.mxu0 %v1116
        %v1218 = vpop.f32.mrf.mxu0
        %v1219 = vadd.f32 0.0, %v1218
        %v1220 = vpop.f32.mrf.mxu0
        %v1221 = vadd.f32 0.0, %v1220
        %1222 = vmatmul.bf16.gmra.mxu0 %v1117
        %v1223 = vpop.f32.mrf.mxu0
        %v1224 = vadd.f32 0.0, %v1223
        %v1225 = vpop.f32.mrf.mxu0
        %v1226 = vadd.f32 0.0, %v1225
        %1227 = vmatmul.bf16.gmra.mxu0 %v1118
        %v1228 = vpop.f32.mrf.mxu0
        %v1229 = vadd.f32 0.0, %v1228
        %v1230 = vpop.f32.mrf.mxu0
        %v1231 = vadd.f32 0.0, %v1230
        %1232 = vdwg.mxu0
        %v1233 = vadd.f32 %v1023, %v1194
        %v1234 = vadd.f32 %v1025, %v1196
        %v1235 = vadd.f32 %v1028, %v1199
        %v1236 = vadd.f32 %v1030, %v1201
        %v1237 = vadd.f32 %v1033, %v1204
        %v1238 = vadd.f32 %v1035, %v1206
        %v1239 = vadd.f32 %v1038, %v1209
        %v1240 = vadd.f32 %v1040, %v1211
        %v1241 = vadd.f32 %v1043, %v1214
        %v1242 = vadd.f32 %v1045, %v1216
        %v1243 = vadd.f32 %v1048, %v1219
        %v1244 = vadd.f32 %v1050, %v1221
        %v1245 = vadd.f32 %v1053, %v1224
        %v1246 = vadd.f32 %v1055, %v1226
        %v1247 = vadd.f32 %v1058, %v1229
        %v1248 = vadd.f32 %v1060, %v1231
        %v1251 = vrot.slane %v750, 7
        %v1252 = vrot.slane %v751, 7
        %v1253 = vsel %vm770, %v1251, %v1252
        %v1256 = vsel %vm770, 0.0, %v1251
        %v1257 = vpack.c.bf16 %v1253, %v1256
        %s1258 = scalar_lea.vmem [#allocation10], 192
        %v1259 = vld [vmem:[%s1258] sm:$0xf]
        %v1260 = vld [vmem:[%s1258 + $0x4] sm:$0xf]
        %v1261 = vld [vmem:[%s1258 + $0x8] sm:$0xf]
        %v1262 = vld [vmem:[%s1258 + $0xc] sm:$0xf]
        %v1263 = vld [vmem:[%s1258 + $0x10] sm:$0xf]
        %v1264 = vld [vmem:[%s1258 + $0x14] sm:$0xf]
        %v1265 = vld [vmem:[%s1258 + $0x18] sm:$0xf]
        %v1266 = vld [vmem:[%s1258 + $0x1c] sm:$0xf]
        %v1267 = vld [vmem:[%s1258 + $0x20] sm:$0xf]
        %v1268 = vld [vmem:[%s1258 + $0x24] sm:$0xf]
        %v1269 = vld [vmem:[%s1258 + $0x28] sm:$0xf]
        %v1270 = vld [vmem:[%s1258 + $0x2c] sm:$0xf]
        %v1271 = vld [vmem:[%s1258 + $0x30] sm:$0xf]
        %v1272 = vld [vmem:[%s1258 + $0x34] sm:$0xf]
        %v1273 = vld [vmem:[%s1258 + $0x38] sm:$0xf]
        %v1274 = vld [vmem:[%s1258 + $0x3c] sm:$0xf]
        %v1291 = vunpack.c.l.b16 %v1259
        %v1292 = vunpack.c.l.b16 %v1260
        %v1293 = vunpack.c.l.b16 %v1261
        %v1294 = vunpack.c.l.b16 %v1262
        %v1295 = vunpack.c.l.b16 %v1263
        %v1296 = vunpack.c.l.b16 %v1264
        %v1297 = vunpack.c.l.b16 %v1265
        %v1298 = vunpack.c.l.b16 %v1266
        %v1299 = vunpack.c.l.b16 %v1267
        %v1300 = vunpack.c.l.b16 %v1268
        %v1301 = vunpack.c.l.b16 %v1269
        %v1302 = vunpack.c.l.b16 %v1270
        %v1303 = vunpack.c.l.b16 %v1271
        %v1304 = vunpack.c.l.b16 %v1272
        %v1305 = vunpack.c.l.b16 %v1273
        %v1306 = vunpack.c.l.b16 %v1274
        %v1307 = vpack.c.b16 %v1292, %v1291
        %v1308 = vpack.c.b16 %v1294, %v1293
        %v1309 = vpack.c.b16 %v1296, %v1295
        %v1310 = vpack.c.b16 %v1298, %v1297
        %v1311 = vpack.c.b16 %v1300, %v1299
        %v1312 = vpack.c.b16 %v1302, %v1301
        %v1313 = vpack.c.b16 %v1304, %v1303
        %v1314 = vpack.c.b16 %v1306, %v1305
        %1323 = vmatpush.bf16.msra.mxu0 %v1314
        %1324 = vmatpush.bf16.msra.mxu0 %v1313
        %1325 = vmatpush.bf16.msra.mxu0 %v1312
        %1326 = vmatpush.bf16.msra.mxu0 %v1311
        %1327 = vmatpush.bf16.msra.mxu0 %v1310
        %1328 = vmatpush.bf16.msra.mxu0 %v1309
        %1329 = vmatpush.bf16.msra.mxu0 %v1308
        %1330 = vmatpush.bf16.msra.mxu0 %v1307
        %1331 = vmatmul.bf16.gmra.mxu0 %v820
        %v1332 = vpop.f32.mrf.mxu0
        %v1333 = vadd.f32 0.0, %v1332
        %v1334 = vpop.f32.mrf.mxu0
        %v1335 = vadd.f32 0.0, %v1334
        %1336 = vmatmul.bf16.gmra.mxu0 %v821
        %v1337 = vpop.f32.mrf.mxu0
        %v1338 = vadd.f32 0.0, %v1337
        %v1339 = vpop.f32.mrf.mxu0
        %v1340 = vadd.f32 0.0, %v1339
        %1341 = vmatmul.bf16.gmra.mxu0 %v822
        %v1342 = vpop.f32.mrf.mxu0
        %v1343 = vadd.f32 0.0, %v1342
        %v1344 = vpop.f32.mrf.mxu0
        %v1345 = vadd.f32 0.0, %v1344
        %1346 = vmatmul.bf16.gmra.mxu0 %v823
        %v1347 = vpop.f32.mrf.mxu0
        %v1348 = vadd.f32 0.0, %v1347
        %v1349 = vpop.f32.mrf.mxu0
        %v1350 = vadd.f32 0.0, %v1349
        %1351 = vmatmul.bf16.gmra.mxu0 %v824
        %v1352 = vpop.f32.mrf.mxu0
        %v1353 = vadd.f32 0.0, %v1352
        %v1354 = vpop.f32.mrf.mxu0
        %v1355 = vadd.f32 0.0, %v1354
        %1356 = vmatmul.bf16.gmra.mxu0 %v825
        %v1357 = vpop.f32.mrf.mxu0
        %v1358 = vadd.f32 0.0, %v1357
        %v1359 = vpop.f32.mrf.mxu0
        %v1360 = vadd.f32 0.0, %v1359
        %1361 = vmatmul.bf16.gmra.mxu0 %v826
        %v1362 = vpop.f32.mrf.mxu0
        %v1363 = vadd.f32 0.0, %v1362
        %v1364 = vpop.f32.mrf.mxu0
        %v1365 = vadd.f32 0.0, %v1364
        %1366 = vmatmul.bf16.gmra.mxu0 %v1257
        %v1367 = vpop.f32.mrf.mxu0
        %v1368 = vadd.f32 0.0, %v1367
        %v1369 = vpop.f32.mrf.mxu0
        %v1370 = vadd.f32 0.0, %v1369
        %1371 = vdwg.mxu0
        %v1372 = vadd.f32 %v1233, %v1333
        %v1373 = vadd.f32 %v1234, %v1335
        %v1374 = vadd.f32 %v1235, %v1338
        %v1375 = vadd.f32 %v1236, %v1340
        %v1376 = vadd.f32 %v1237, %v1343
        %v1377 = vadd.f32 %v1238, %v1345
        %v1378 = vadd.f32 %v1239, %v1348
        %v1379 = vadd.f32 %v1240, %v1350
        %v1380 = vadd.f32 %v1241, %v1353
        %v1381 = vadd.f32 %v1242, %v1355
        %v1382 = vadd.f32 %v1243, %v1358
        %v1383 = vadd.f32 %v1244, %v1360
        %v1384 = vadd.f32 %v1245, %v1363
        %v1385 = vadd.f32 %v1246, %v1365
        %v1386 = vadd.f32 %v1247, %v1368
        %v1387 = vadd.f32 %v1248, %v1370
        %v1388 = vpack.c.bf16 %v751, %v750
        %s1389 = scalar_lea.vmem [#allocation10], 256
        %v1390 = vld [vmem:[%s1389] sm:$0xf]
        %v1391 = vld [vmem:[%s1389 + $0x4] sm:$0xf]
        %v1392 = vld [vmem:[%s1389 + $0x8] sm:$0xf]
        %v1393 = vld [vmem:[%s1389 + $0xc] sm:$0xf]
        %v1394 = vld [vmem:[%s1389 + $0x10] sm:$0xf]
        %v1395 = vld [vmem:[%s1389 + $0x14] sm:$0xf]
        %v1396 = vld [vmem:[%s1389 + $0x18] sm:$0xf]
        %v1397 = vld [vmem:[%s1389 + $0x1c] sm:$0xf]
        %v1398 = vld [vmem:[%s1389 + $0x20] sm:$0xf]
        %v1399 = vld [vmem:[%s1389 + $0x24] sm:$0xf]
        %v1400 = vld [vmem:[%s1389 + $0x28] sm:$0xf]
        %v1401 = vld [vmem:[%s1389 + $0x2c] sm:$0xf]
        %v1402 = vld [vmem:[%s1389 + $0x30] sm:$0xf]
        %v1403 = vld [vmem:[%s1389 + $0x34] sm:$0xf]
        %v1404 = vld [vmem:[%s1389 + $0x38] sm:$0xf]
        %v1405 = vld [vmem:[%s1389 + $0x3c] sm:$0xf]
        %v1422 = vunpack.c.l.b16 %v1390
        %v1423 = vunpack.c.l.b16 %v1391
        %v1424 = vunpack.c.l.b16 %v1392
        %v1425 = vunpack.c.l.b16 %v1393
        %v1426 = vunpack.c.l.b16 %v1394
        %v1427 = vunpack.c.l.b16 %v1395
        %v1428 = vunpack.c.l.b16 %v1396
        %v1429 = vunpack.c.l.b16 %v1397
        %v1430 = vunpack.c.l.b16 %v1398
        %v1431 = vunpack.c.l.b16 %v1399
        %v1432 = vunpack.c.l.b16 %v1400
        %v1433 = vunpack.c.l.b16 %v1401
        %v1434 = vunpack.c.l.b16 %v1402
        %v1435 = vunpack.c.l.b16 %v1403
        %v1436 = vunpack.c.l.b16 %v1404
        %v1437 = vunpack.c.l.b16 %v1405
        %v1438 = vpack.c.b16 %v1423, %v1422
        %v1439 = vpack.c.b16 %v1425, %v1424
        %v1440 = vpack.c.b16 %v1427, %v1426
        %v1441 = vpack.c.b16 %v1429, %v1428
        %v1442 = vpack.c.b16 %v1431, %v1430
        %v1443 = vpack.c.b16 %v1433, %v1432
        %v1444 = vpack.c.b16 %v1435, %v1434
        %v1445 = vpack.c.b16 %v1437, %v1436
        %1454 = vmatpush.bf16.msra.mxu0 %v1445
        %1455 = vmatpush.bf16.msra.mxu0 %v1444
        %1456 = vmatpush.bf16.msra.mxu0 %v1443
        %1457 = vmatpush.bf16.msra.mxu0 %v1442
        %1458 = vmatpush.bf16.msra.mxu0 %v1441
        %1459 = vmatpush.bf16.msra.mxu0 %v1440
        %1460 = vmatpush.bf16.msra.mxu0 %v1439
        %1461 = vmatpush.bf16.msra.mxu0 %v1438
        %1462 = vmatmul.bf16.gmra.mxu0 %v844
        %v1463 = vpop.f32.mrf.mxu0
        %v1464 = vadd.f32 0.0, %v1463
        %v1465 = vpop.f32.mrf.mxu0
        %v1466 = vadd.f32 0.0, %v1465
        %1467 = vmatmul.bf16.gmra.mxu0 %v845
        %v1468 = vpop.f32.mrf.mxu0
        %v1469 = vadd.f32 0.0, %v1468
        %v1470 = vpop.f32.mrf.mxu0
        %v1471 = vadd.f32 0.0, %v1470
        %1472 = vmatmul.bf16.gmra.mxu0 %v846
        %v1473 = vpop.f32.mrf.mxu0
        %v1474 = vadd.f32 0.0, %v1473
        %v1475 = vpop.f32.mrf.mxu0
        %v1476 = vadd.f32 0.0, %v1475
        %1477 = vmatmul.bf16.gmra.mxu0 %v847
        %v1478 = vpop.f32.mrf.mxu0
        %v1479 = vadd.f32 0.0, %v1478
        %v1480 = vpop.f32.mrf.mxu0
        %v1481 = vadd.f32 0.0, %v1480
        %1482 = vmatmul.bf16.gmra.mxu0 %v848
        %v1483 = vpop.f32.mrf.mxu0
        %v1484 = vadd.f32 0.0, %v1483
        %v1485 = vpop.f32.mrf.mxu0
        %v1486 = vadd.f32 0.0, %v1485
        %1487 = vmatmul.bf16.gmra.mxu0 %v849
        %v1488 = vpop.f32.mrf.mxu0
        %v1489 = vadd.f32 0.0, %v1488
        %v1490 = vpop.f32.mrf.mxu0
        %v1491 = vadd.f32 0.0, %v1490
        %1492 = vmatmul.bf16.gmra.mxu0 %v850
        %v1493 = vpop.f32.mrf.mxu0
        %v1494 = vadd.f32 0.0, %v1493
        %v1495 = vpop.f32.mrf.mxu0
        %v1496 = vadd.f32 0.0, %v1495
        %1497 = vmatmul.bf16.gmra.mxu0 %v1388
        %v1498 = vpop.f32.mrf.mxu0
        %v1499 = vadd.f32 0.0, %v1498
        %v1500 = vpop.f32.mrf.mxu0
        %v1501 = vadd.f32 0.0, %v1500
        %1502 = vdwg.mxu0
        %v1503 = vadd.f32 %v1372, %v1464
        %v1504 = vadd.f32 %v1373, %v1466
        %v1505 = vadd.f32 %v1374, %v1469
        %v1506 = vadd.f32 %v1375, %v1471
        %v1507 = vadd.f32 %v1376, %v1474
        %v1508 = vadd.f32 %v1377, %v1476
        %v1509 = vadd.f32 %v1378, %v1479
        %v1510 = vadd.f32 %v1379, %v1481
        %v1511 = vadd.f32 %v1380, %v1484
        %v1512 = vadd.f32 %v1381, %v1486
        %v1513 = vadd.f32 %v1382, %v1489
        %v1514 = vadd.f32 %v1383, %v1491
        %v1515 = vadd.f32 %v1384, %v1494
        %v1516 = vadd.f32 %v1385, %v1496
        %v1517 = vadd.f32 %v1386, %v1499
        %v1518 = vadd.f32 %v1387, %v1501
        %v1519 = vrot.slane %v750, 1
        %v1520 = vrot.slane %v751, 1
        %v1521 = vsel %vm1062, %v1519, %v1520
        %v1524 = vsel %vm1062, %v1520, 0.0
        %v1525 = vpack.c.bf16 %v1524, %v1521
        %s1526 = scalar_lea.vmem [#allocation10], 320
        %v1527 = vld [vmem:[%s1526] sm:$0xf]
        %v1528 = vld [vmem:[%s1526 + $0x4] sm:$0xf]
        %v1529 = vld [vmem:[%s1526 + $0x8] sm:$0xf]
        %v1530 = vld [vmem:[%s1526 + $0xc] sm:$0xf]
        %v1531 = vld [vmem:[%s1526 + $0x10] sm:$0xf]
        %v1532 = vld [vmem:[%s1526 + $0x14] sm:$0xf]
        %v1533 = vld [vmem:[%s1526 + $0x18] sm:$0xf]
        %v1534 = vld [vmem:[%s1526 + $0x1c] sm:$0xf]
        %v1535 = vld [vmem:[%s1526 + $0x20] sm:$0xf]
        %v1536 = vld [vmem:[%s1526 + $0x24] sm:$0xf]
        %v1537 = vld [vmem:[%s1526 + $0x28] sm:$0xf]
        %v1538 = vld [vmem:[%s1526 + $0x2c] sm:$0xf]
        %v1539 = vld [vmem:[%s1526 + $0x30] sm:$0xf]
        %v1540 = vld [vmem:[%s1526 + $0x34] sm:$0xf]
        %v1541 = vld [vmem:[%s1526 + $0x38] sm:$0xf]
        %v1542 = vld [vmem:[%s1526 + $0x3c] sm:$0xf]
        %v1559 = vunpack.c.l.b16 %v1527
        %v1560 = vunpack.c.l.b16 %v1528
        %v1561 = vunpack.c.l.b16 %v1529
        %v1562 = vunpack.c.l.b16 %v1530
        %v1563 = vunpack.c.l.b16 %v1531
        %v1564 = vunpack.c.l.b16 %v1532
        %v1565 = vunpack.c.l.b16 %v1533
        %v1566 = vunpack.c.l.b16 %v1534
        %v1567 = vunpack.c.l.b16 %v1535
        %v1568 = vunpack.c.l.b16 %v1536
        %v1569 = vunpack.c.l.b16 %v1537
        %v1570 = vunpack.c.l.b16 %v1538
        %v1571 = vunpack.c.l.b16 %v1539
        %v1572 = vunpack.c.l.b16 %v1540
        %v1573 = vunpack.c.l.b16 %v1541
        %v1574 = vunpack.c.l.b16 %v1542
        %v1575 = vpack.c.b16 %v1560, %v1559
        %v1576 = vpack.c.b16 %v1562, %v1561
        %v1577 = vpack.c.b16 %v1564, %v1563
        %v1578 = vpack.c.b16 %v1566, %v1565
        %v1579 = vpack.c.b16 %v1568, %v1567
        %v1580 = vpack.c.b16 %v1570, %v1569
        %v1581 = vpack.c.b16 %v1572, %v1571
        %v1582 = vpack.c.b16 %v1574, %v1573
        %1591 = vmatpush.bf16.msra.mxu0 %v1582
        %1592 = vmatpush.bf16.msra.mxu0 %v1581
        %1593 = vmatpush.bf16.msra.mxu0 %v1580
        %1594 = vmatpush.bf16.msra.mxu0 %v1579
        %1595 = vmatpush.bf16.msra.mxu0 %v1578
        %1596 = vmatpush.bf16.msra.mxu0 %v1577
        %1597 = vmatpush.bf16.msra.mxu0 %v1576
        %1598 = vmatpush.bf16.msra.mxu0 %v1575
        %1599 = vmatmul.bf16.gmra.mxu0 %v1112
        %v1600 = vpop.f32.mrf.mxu0
        %v1601 = vadd.f32 0.0, %v1600
        %v1602 = vpop.f32.mrf.mxu0
        %v1603 = vadd.f32 0.0, %v1602
        %1604 = vmatmul.bf16.gmra.mxu0 %v1113
        %v1605 = vpop.f32.mrf.mxu0
        %v1606 = vadd.f32 0.0, %v1605
        %v1607 = vpop.f32.mrf.mxu0
        %v1608 = vadd.f32 0.0, %v1607
        %1609 = vmatmul.bf16.gmra.mxu0 %v1114
        %v1610 = vpop.f32.mrf.mxu0
        %v1611 = vadd.f32 0.0, %v1610
        %v1612 = vpop.f32.mrf.mxu0
        %v1613 = vadd.f32 0.0, %v1612
        %1614 = vmatmul.bf16.gmra.mxu0 %v1115
        %v1615 = vpop.f32.mrf.mxu0
        %v1616 = vadd.f32 0.0, %v1615
        %v1617 = vpop.f32.mrf.mxu0
        %v1618 = vadd.f32 0.0, %v1617
        %1619 = vmatmul.bf16.gmra.mxu0 %v1116
        %v1620 = vpop.f32.mrf.mxu0
        %v1621 = vadd.f32 0.0, %v1620
        %v1622 = vpop.f32.mrf.mxu0
        %v1623 = vadd.f32 0.0, %v1622
        %1624 = vmatmul.bf16.gmra.mxu0 %v1117
        %v1625 = vpop.f32.mrf.mxu0
        %v1626 = vadd.f32 0.0, %v1625
        %v1627 = vpop.f32.mrf.mxu0
        %v1628 = vadd.f32 0.0, %v1627
        %1629 = vmatmul.bf16.gmra.mxu0 %v1118
        %v1630 = vpop.f32.mrf.mxu0
        %v1631 = vadd.f32 0.0, %v1630
        %v1632 = vpop.f32.mrf.mxu0
        %v1633 = vadd.f32 0.0, %v1632
        %1634 = vmatmul.bf16.gmra.mxu0 %v1525
        %v1635 = vpop.f32.mrf.mxu0
        %v1636 = vadd.f32 0.0, %v1635
        %v1637 = vpop.f32.mrf.mxu0
        %v1638 = vadd.f32 0.0, %v1637
        %1639 = vdwg.mxu0
        %v1640 = vadd.f32 %v1503, %v1601
        %v1641 = vadd.f32 %v1504, %v1603
        %v1642 = vadd.f32 %v1505, %v1606
        %v1643 = vadd.f32 %v1506, %v1608
        %v1644 = vadd.f32 %v1507, %v1611
        %v1645 = vadd.f32 %v1508, %v1613
        %v1646 = vadd.f32 %v1509, %v1616
        %v1647 = vadd.f32 %v1510, %v1618
        %v1648 = vadd.f32 %v1511, %v1621
        %v1649 = vadd.f32 %v1512, %v1623
        %v1650 = vadd.f32 %v1513, %v1626
        %v1651 = vadd.f32 %v1514, %v1628
        %v1652 = vadd.f32 %v1515, %v1631
        %v1653 = vadd.f32 %v1516, %v1633
        %v1654 = vadd.f32 %v1517, %v1636
        %v1655 = vadd.f32 %v1518, %v1638
        %v1658 = vrot.slane %v752, 7
        %v1659 = vrot.slane %v753, 7
        %v1660 = vsel %vm770, %v1658, %v1659
        %v1663 = vsel %vm770, 0.0, %v1658
        %v1664 = vpack.c.bf16 %v1660, %v1663
        %s1665 = scalar_lea.vmem [#allocation10], 384
        %v1666 = vld [vmem:[%s1665] sm:$0xf]
        %v1667 = vld [vmem:[%s1665 + $0x4] sm:$0xf]
        %v1668 = vld [vmem:[%s1665 + $0x8] sm:$0xf]
        %v1669 = vld [vmem:[%s1665 + $0xc] sm:$0xf]
        %v1670 = vld [vmem:[%s1665 + $0x10] sm:$0xf]
        %v1671 = vld [vmem:[%s1665 + $0x14] sm:$0xf]
        %v1672 = vld [vmem:[%s1665 + $0x18] sm:$0xf]
        %v1673 = vld [vmem:[%s1665 + $0x1c] sm:$0xf]
        %v1674 = vld [vmem:[%s1665 + $0x20] sm:$0xf]
        %v1675 = vld [vmem:[%s1665 + $0x24] sm:$0xf]
        %v1676 = vld [vmem:[%s1665 + $0x28] sm:$0xf]
        %v1677 = vld [vmem:[%s1665 + $0x2c] sm:$0xf]
        %v1678 = vld [vmem:[%s1665 + $0x30] sm:$0xf]
        %v1679 = vld [vmem:[%s1665 + $0x34] sm:$0xf]
        %v1680 = vld [vmem:[%s1665 + $0x38] sm:$0xf]
        %v1681 = vld [vmem:[%s1665 + $0x3c] sm:$0xf]
        %v1698 = vunpack.c.l.b16 %v1666
        %v1699 = vunpack.c.l.b16 %v1667
        %v1700 = vunpack.c.l.b16 %v1668
        %v1701 = vunpack.c.l.b16 %v1669
        %v1702 = vunpack.c.l.b16 %v1670
        %v1703 = vunpack.c.l.b16 %v1671
        %v1704 = vunpack.c.l.b16 %v1672
        %v1705 = vunpack.c.l.b16 %v1673
        %v1706 = vunpack.c.l.b16 %v1674
        %v1707 = vunpack.c.l.b16 %v1675
        %v1708 = vunpack.c.l.b16 %v1676
        %v1709 = vunpack.c.l.b16 %v1677
        %v1710 = vunpack.c.l.b16 %v1678
        %v1711 = vunpack.c.l.b16 %v1679
        %v1712 = vunpack.c.l.b16 %v1680
        %v1713 = vunpack.c.l.b16 %v1681
        %v1714 = vpack.c.b16 %v1699, %v1698
        %v1715 = vpack.c.b16 %v1701, %v1700
        %v1716 = vpack.c.b16 %v1703, %v1702
        %v1717 = vpack.c.b16 %v1705, %v1704
        %v1718 = vpack.c.b16 %v1707, %v1706
        %v1719 = vpack.c.b16 %v1709, %v1708
        %v1720 = vpack.c.b16 %v1711, %v1710
        %v1721 = vpack.c.b16 %v1713, %v1712
        %1730 = vmatpush.bf16.msra.mxu0 %v1721
        %1731 = vmatpush.bf16.msra.mxu0 %v1720
        %1732 = vmatpush.bf16.msra.mxu0 %v1719
        %1733 = vmatpush.bf16.msra.mxu0 %v1718
        %1734 = vmatpush.bf16.msra.mxu0 %v1717
        %1735 = vmatpush.bf16.msra.mxu0 %v1716
        %1736 = vmatpush.bf16.msra.mxu0 %v1715
        %1737 = vmatpush.bf16.msra.mxu0 %v1714
        %1738 = vmatmul.bf16.gmra.mxu0 %v821
        %v1739 = vpop.f32.mrf.mxu0
        %v1740 = vadd.f32 0.0, %v1739
        %v1741 = vpop.f32.mrf.mxu0
        %v1742 = vadd.f32 0.0, %v1741
        %1743 = vmatmul.bf16.gmra.mxu0 %v822
        %v1744 = vpop.f32.mrf.mxu0
        %v1745 = vadd.f32 0.0, %v1744
        %v1746 = vpop.f32.mrf.mxu0
        %v1747 = vadd.f32 0.0, %v1746
        %1748 = vmatmul.bf16.gmra.mxu0 %v823
        %v1749 = vpop.f32.mrf.mxu0
        %v1750 = vadd.f32 0.0, %v1749
        %v1751 = vpop.f32.mrf.mxu0
        %v1752 = vadd.f32 0.0, %v1751
        %1753 = vmatmul.bf16.gmra.mxu0 %v824
        %v1754 = vpop.f32.mrf.mxu0
        %v1755 = vadd.f32 0.0, %v1754
        %v1756 = vpop.f32.mrf.mxu0
        %v1757 = vadd.f32 0.0, %v1756
        %1758 = vmatmul.bf16.gmra.mxu0 %v825
        %v1759 = vpop.f32.mrf.mxu0
        %v1760 = vadd.f32 0.0, %v1759
        %v1761 = vpop.f32.mrf.mxu0
        %v1762 = vadd.f32 0.0, %v1761
        %1763 = vmatmul.bf16.gmra.mxu0 %v826
        %v1764 = vpop.f32.mrf.mxu0
        %v1765 = vadd.f32 0.0, %v1764
        %v1766 = vpop.f32.mrf.mxu0
        %v1767 = vadd.f32 0.0, %v1766
        %1768 = vmatmul.bf16.gmra.mxu0 %v1257
        %v1769 = vpop.f32.mrf.mxu0
        %v1770 = vadd.f32 0.0, %v1769
        %v1771 = vpop.f32.mrf.mxu0
        %v1772 = vadd.f32 0.0, %v1771
        %1773 = vmatmul.bf16.gmra.mxu0 %v1664
        %v1774 = vpop.f32.mrf.mxu0
        %v1775 = vadd.f32 0.0, %v1774
        %v1776 = vpop.f32.mrf.mxu0
        %v1777 = vadd.f32 0.0, %v1776
        %1778 = vdwg.mxu0
        %v1779 = vadd.f32 %v1640, %v1740
        %v1780 = vadd.f32 %v1641, %v1742
        %v1781 = vadd.f32 %v1642, %v1745
        %v1782 = vadd.f32 %v1643, %v1747
        %v1783 = vadd.f32 %v1644, %v1750
        %v1784 = vadd.f32 %v1645, %v1752
        %v1785 = vadd.f32 %v1646, %v1755
        %v1786 = vadd.f32 %v1647, %v1757
        %v1787 = vadd.f32 %v1648, %v1760
        %v1788 = vadd.f32 %v1649, %v1762
        %v1789 = vadd.f32 %v1650, %v1765
        %v1790 = vadd.f32 %v1651, %v1767
        %v1791 = vadd.f32 %v1652, %v1770
        %v1792 = vadd.f32 %v1653, %v1772
        %v1793 = vadd.f32 %v1654, %v1775
        %v1794 = vadd.f32 %v1655, %v1777
        %v1795 = vpack.c.bf16 %v753, %v752
        %s1796 = scalar_lea.vmem [#allocation10], 448
        %v1797 = vld [vmem:[%s1796] sm:$0xf]
        %v1798 = vld [vmem:[%s1796 + $0x4] sm:$0xf]
        %v1799 = vld [vmem:[%s1796 + $0x8] sm:$0xf]
        %v1800 = vld [vmem:[%s1796 + $0xc] sm:$0xf]
        %v1801 = vld [vmem:[%s1796 + $0x10] sm:$0xf]
        %v1802 = vld [vmem:[%s1796 + $0x14] sm:$0xf]
        %v1803 = vld [vmem:[%s1796 + $0x18] sm:$0xf]
        %v1804 = vld [vmem:[%s1796 + $0x1c] sm:$0xf]
        %v1805 = vld [vmem:[%s1796 + $0x20] sm:$0xf]
        %v1806 = vld [vmem:[%s1796 + $0x24] sm:$0xf]
        %v1807 = vld [vmem:[%s1796 + $0x28] sm:$0xf]
        %v1808 = vld [vmem:[%s1796 + $0x2c] sm:$0xf]
        %v1809 = vld [vmem:[%s1796 + $0x30] sm:$0xf]
        %v1810 = vld [vmem:[%s1796 + $0x34] sm:$0xf]
        %v1811 = vld [vmem:[%s1796 + $0x38] sm:$0xf]
        %v1812 = vld [vmem:[%s1796 + $0x3c] sm:$0xf]
        %v1829 = vunpack.c.l.b16 %v1797
        %v1830 = vunpack.c.l.b16 %v1798
        %v1831 = vunpack.c.l.b16 %v1799
        %v1832 = vunpack.c.l.b16 %v1800
        %v1833 = vunpack.c.l.b16 %v1801
        %v1834 = vunpack.c.l.b16 %v1802
        %v1835 = vunpack.c.l.b16 %v1803
        %v1836 = vunpack.c.l.b16 %v1804
        %v1837 = vunpack.c.l.b16 %v1805
        %v1838 = vunpack.c.l.b16 %v1806
        %v1839 = vunpack.c.l.b16 %v1807
        %v1840 = vunpack.c.l.b16 %v1808
        %v1841 = vunpack.c.l.b16 %v1809
        %v1842 = vunpack.c.l.b16 %v1810
        %v1843 = vunpack.c.l.b16 %v1811
        %v1844 = vunpack.c.l.b16 %v1812
        %v1845 = vpack.c.b16 %v1830, %v1829
        %v1846 = vpack.c.b16 %v1832, %v1831
        %v1847 = vpack.c.b16 %v1834, %v1833
        %v1848 = vpack.c.b16 %v1836, %v1835
        %v1849 = vpack.c.b16 %v1838, %v1837
        %v1850 = vpack.c.b16 %v1840, %v1839
        %v1851 = vpack.c.b16 %v1842, %v1841
        %v1852 = vpack.c.b16 %v1844, %v1843
        %1861 = vmatpush.bf16.msra.mxu0 %v1852
        %1862 = vmatpush.bf16.msra.mxu0 %v1851
        %1863 = vmatpush.bf16.msra.mxu0 %v1850
        %1864 = vmatpush.bf16.msra.mxu0 %v1849
        %1865 = vmatpush.bf16.msra.mxu0 %v1848
        %1866 = vmatpush.bf16.msra.mxu0 %v1847
        %1867 = vmatpush.bf16.msra.mxu0 %v1846
        %1868 = vmatpush.bf16.msra.mxu0 %v1845
        %1869 = vmatmul.bf16.gmra.mxu0 %v845
        %v1870 = vpop.f32.mrf.mxu0
        %v1871 = vadd.f32 0.0, %v1870
        %v1872 = vpop.f32.mrf.mxu0
        %v1873 = vadd.f32 0.0, %v1872
        %1874 = vmatmul.bf16.gmra.mxu0 %v846
        %v1875 = vpop.f32.mrf.mxu0
        %v1876 = vadd.f32 0.0, %v1875
        %v1877 = vpop.f32.mrf.mxu0
        %v1878 = vadd.f32 0.0, %v1877
        %1879 = vmatmul.bf16.gmra.mxu0 %v847
        %v1880 = vpop.f32.mrf.mxu0
        %v1881 = vadd.f32 0.0, %v1880
        %v1882 = vpop.f32.mrf.mxu0
        %v1883 = vadd.f32 0.0, %v1882
        %1884 = vmatmul.bf16.gmra.mxu0 %v848
        %v1885 = vpop.f32.mrf.mxu0
        %v1886 = vadd.f32 0.0, %v1885
        %v1887 = vpop.f32.mrf.mxu0
        %v1888 = vadd.f32 0.0, %v1887
        %1889 = vmatmul.bf16.gmra.mxu0 %v849
        %v1890 = vpop.f32.mrf.mxu0
        %v1891 = vadd.f32 0.0, %v1890
        %v1892 = vpop.f32.mrf.mxu0
        %v1893 = vadd.f32 0.0, %v1892
        %1894 = vmatmul.bf16.gmra.mxu0 %v850
        %v1895 = vpop.f32.mrf.mxu0
        %v1896 = vadd.f32 0.0, %v1895
        %v1897 = vpop.f32.mrf.mxu0
        %v1898 = vadd.f32 0.0, %v1897
        %1899 = vmatmul.bf16.gmra.mxu0 %v1388
        %v1900 = vpop.f32.mrf.mxu0
        %v1901 = vadd.f32 0.0, %v1900
        %v1902 = vpop.f32.mrf.mxu0
        %v1903 = vadd.f32 0.0, %v1902
        %1904 = vmatmul.bf16.gmra.mxu0 %v1795
        %v1905 = vpop.f32.mrf.mxu0
        %v1906 = vadd.f32 0.0, %v1905
        %v1907 = vpop.f32.mrf.mxu0
        %v1908 = vadd.f32 0.0, %v1907
        %1909 = vdwg.mxu0
        %v1910 = vadd.f32 %v1779, %v1871
        %v1911 = vadd.f32 %v1780, %v1873
        %v1912 = vadd.f32 %v1781, %v1876
        %v1913 = vadd.f32 %v1782, %v1878
        %v1914 = vadd.f32 %v1783, %v1881
        %v1915 = vadd.f32 %v1784, %v1883
        %v1916 = vadd.f32 %v1785, %v1886
        %v1917 = vadd.f32 %v1786, %v1888
        %v1918 = vadd.f32 %v1787, %v1891
        %v1919 = vadd.f32 %v1788, %v1893
        %v1920 = vadd.f32 %v1789, %v1896
        %v1921 = vadd.f32 %v1790, %v1898
        %v1922 = vadd.f32 %v1791, %v1901
        %v1923 = vadd.f32 %v1792, %v1903
        %v1924 = vadd.f32 %v1793, %v1906
        %v1925 = vadd.f32 %v1794, %v1908
        %v1926 = vrot.slane %v752, 1
        %v1927 = vrot.slane %v753, 1
        %v1928 = vsel %vm1062, %v1926, %v1927
        %v1931 = vsel %vm1062, %v1927, 0.0
        %v1932 = vpack.c.bf16 %v1931, %v1928
        %s1933 = scalar_lea.vmem [#allocation10], 512
        %v1934 = vld [vmem:[%s1933] sm:$0xf]
        %v1935 = vld [vmem:[%s1933 + $0x4] sm:$0xf]
        %v1936 = vld [vmem:[%s1933 + $0x8] sm:$0xf]
        %v1937 = vld [vmem:[%s1933 + $0xc] sm:$0xf]
        %v1938 = vld [vmem:[%s1933 + $0x10] sm:$0xf]
        %v1939 = vld [vmem:[%s1933 + $0x14] sm:$0xf]
        %v1940 = vld [vmem:[%s1933 + $0x18] sm:$0xf]
        %v1941 = vld [vmem:[%s1933 + $0x1c] sm:$0xf]
        %v1942 = vld [vmem:[%s1933 + $0x20] sm:$0xf]
        %v1943 = vld [vmem:[%s1933 + $0x24] sm:$0xf]
        %v1944 = vld [vmem:[%s1933 + $0x28] sm:$0xf]
        %v1945 = vld [vmem:[%s1933 + $0x2c] sm:$0xf]
        %v1946 = vld [vmem:[%s1933 + $0x30] sm:$0xf]
        %v1947 = vld [vmem:[%s1933 + $0x34] sm:$0xf]
        %v1948 = vld [vmem:[%s1933 + $0x38] sm:$0xf]
        %v1949 = vld [vmem:[%s1933 + $0x3c] sm:$0xf]
        %v1966 = vunpack.c.l.b16 %v1934
        %v1967 = vunpack.c.l.b16 %v1935
        %v1968 = vunpack.c.l.b16 %v1936
        %v1969 = vunpack.c.l.b16 %v1937
        %v1970 = vunpack.c.l.b16 %v1938
        %v1971 = vunpack.c.l.b16 %v1939
        %v1972 = vunpack.c.l.b16 %v1940
        %v1973 = vunpack.c.l.b16 %v1941
        %v1974 = vunpack.c.l.b16 %v1942
        %v1975 = vunpack.c.l.b16 %v1943
        %v1976 = vunpack.c.l.b16 %v1944
        %v1977 = vunpack.c.l.b16 %v1945
        %v1978 = vunpack.c.l.b16 %v1946
        %v1979 = vunpack.c.l.b16 %v1947
        %v1980 = vunpack.c.l.b16 %v1948
        %v1981 = vunpack.c.l.b16 %v1949
        %v1982 = vpack.c.b16 %v1967, %v1966
        %v1983 = vpack.c.b16 %v1969, %v1968
        %v1984 = vpack.c.b16 %v1971, %v1970
        %v1985 = vpack.c.b16 %v1973, %v1972
        %v1986 = vpack.c.b16 %v1975, %v1974
        %v1987 = vpack.c.b16 %v1977, %v1976
        %v1988 = vpack.c.b16 %v1979, %v1978
        %v1989 = vpack.c.b16 %v1981, %v1980
        %1998 = vmatpush.bf16.msra.mxu0 %v1989
        %1999 = vmatpush.bf16.msra.mxu0 %v1988
        %2000 = vmatpush.bf16.msra.mxu0 %v1987
        %2001 = vmatpush.bf16.msra.mxu0 %v1986
        %2002 = vmatpush.bf16.msra.mxu0 %v1985
        %2003 = vmatpush.bf16.msra.mxu0 %v1984
        %2004 = vmatpush.bf16.msra.mxu0 %v1983
        %2005 = vmatpush.bf16.msra.mxu0 %v1982
        %2006 = vmatmul.bf16.gmra.mxu0 %v1113
        %v2007 = vpop.f32.mrf.mxu0
        %v2008 = vadd.f32 0.0, %v2007
        %v2009 = vpop.f32.mrf.mxu0
        %v2010 = vadd.f32 0.0, %v2009
        %2011 = vmatmul.bf16.gmra.mxu0 %v1114
        %v2012 = vpop.f32.mrf.mxu0
        %v2013 = vadd.f32 0.0, %v2012
        %v2014 = vpop.f32.mrf.mxu0
        %v2015 = vadd.f32 0.0, %v2014
        %2016 = vmatmul.bf16.gmra.mxu0 %v1115
        %v2017 = vpop.f32.mrf.mxu0
        %v2018 = vadd.f32 0.0, %v2017
        %v2019 = vpop.f32.mrf.mxu0
        %v2020 = vadd.f32 0.0, %v2019
        %2021 = vmatmul.bf16.gmra.mxu0 %v1116
        %v2022 = vpop.f32.mrf.mxu0
        %v2023 = vadd.f32 0.0, %v2022
        %v2024 = vpop.f32.mrf.mxu0
        %v2025 = vadd.f32 0.0, %v2024
        %2026 = vmatmul.bf16.gmra.mxu0 %v1117
        %v2027 = vpop.f32.mrf.mxu0
        %v2028 = vadd.f32 0.0, %v2027
        %v2029 = vpop.f32.mrf.mxu0
        %v2030 = vadd.f32 0.0, %v2029
        %2031 = vmatmul.bf16.gmra.mxu0 %v1118
        %v2032 = vpop.f32.mrf.mxu0
        %v2033 = vadd.f32 0.0, %v2032
        %v2034 = vpop.f32.mrf.mxu0
        %v2035 = vadd.f32 0.0, %v2034
        %2036 = vmatmul.bf16.gmra.mxu0 %v1525
        %v2037 = vpop.f32.mrf.mxu0
        %v2038 = vadd.f32 0.0, %v2037
        %v2039 = vpop.f32.mrf.mxu0
        %v2040 = vadd.f32 0.0, %v2039
        %2041 = vmatmul.bf16.gmra.mxu0 %v1932
        %v2042 = vpop.f32.mrf.mxu0
        %v2043 = vadd.f32 0.0, %v2042
        %v2044 = vpop.f32.mrf.mxu0
        %v2045 = vadd.f32 0.0, %v2044
        %2046 = vdwg.mxu0
        %v2047 = vadd.f32 %v1910, %v2008
        %v2048 = vadd.f32 %v1911, %v2010
        %v2049 = vadd.f32 %v1912, %v2013
        %v2050 = vadd.f32 %v1913, %v2015
        %v2051 = vadd.f32 %v1914, %v2018
        %v2052 = vadd.f32 %v1915, %v2020
        %v2053 = vadd.f32 %v1916, %v2023
        %v2054 = vadd.f32 %v1917, %v2025
        %v2055 = vadd.f32 %v1918, %v2028
        %v2056 = vadd.f32 %v1919, %v2030
        %v2057 = vadd.f32 %v1920, %v2033
        %v2058 = vadd.f32 %v1921, %v2035
        %v2059 = vadd.f32 %v1922, %v2038
        %v2060 = vadd.f32 %v1923, %v2040
        %v2061 = vadd.f32 %v1924, %v2043
        %v2062 = vadd.f32 %v1925, %v2045
        %v2063 = vld [vmem:[%s6] sm:$0x1]
        %v2065 = vperm.slane %v2063, 0
        %v2067 = vadd.f32 %v2047, %v2065
        %v2068 = vadd.f32 %v2048, %v2065
        %v2069 = vadd.f32 %v2049, %v2065
        %v2070 = vadd.f32 %v2050, %v2065
        %v2071 = vadd.f32 %v2051, %v2065
        %v2072 = vadd.f32 %v2052, %v2065
        %v2073 = vadd.f32 %v2053, %v2065
        %v2074 = vadd.f32 %v2054, %v2065
        %v2075 = vadd.f32 %v2055, %v2065
        %v2076 = vadd.f32 %v2056, %v2065
        %v2077 = vadd.f32 %v2057, %v2065
        %v2078 = vadd.f32 %v2058, %v2065
        %v2079 = vadd.f32 %v2059, %v2065
        %v2080 = vadd.f32 %v2060, %v2065
        %v2081 = vadd.f32 %v2061, %v2065
        %v2082 = vadd.f32 %v2062, %v2065
        %v2083 = vmax.f32 %v2067, 0.0
        %v2084 = vmax.f32 %v2068, 0.0
        %v2085 = vmax.f32 %v2069, 0.0
        %v2086 = vmax.f32 %v2070, 0.0
        %v2087 = vmax.f32 %v2071, 0.0
        %v2088 = vmax.f32 %v2072, 0.0
        %v2089 = vmax.f32 %v2073, 0.0
        %v2090 = vmax.f32 %v2074, 0.0
        %v2091 = vmax.f32 %v2075, 0.0
        %v2092 = vmax.f32 %v2076, 0.0
        %v2093 = vmax.f32 %v2077, 0.0
        %v2094 = vmax.f32 %v2078, 0.0
        %v2095 = vmax.f32 %v2079, 0.0
        %v2096 = vmax.f32 %v2080, 0.0
        %v2097 = vmax.f32 %v2081, 0.0
        %v2098 = vmax.f32 %v2082, 0.0
        %v2099 = vpack.c.bf16 %v2084, %v2083
        %v2100 = vpack.c.bf16 %v2086, %v2085
        %v2101 = vpack.c.bf16 %v2088, %v2087
        %v2102 = vpack.c.bf16 %v2090, %v2089
        %v2103 = vpack.c.bf16 %v2092, %v2091
        %v2104 = vpack.c.bf16 %v2094, %v2093
        %v2105 = vpack.c.bf16 %v2096, %v2095
        %v2106 = vpack.c.bf16 %v2098, %v2097
        %v2107 = vld [vmem:[#allocation11] sm:$0xf]
        %v2108 = vld [vmem:[#allocation11 + $0x4] sm:$0xf]
        %v2109 = vld [vmem:[#allocation11 + $0x8] sm:$0xf]
        %v2110 = vld [vmem:[#allocation11 + $0xc] sm:$0xf]
        %v2111 = vld [vmem:[#allocation11 + $0x10] sm:$0xf]
        %v2112 = vld [vmem:[#allocation11 + $0x14] sm:$0xf]
        %v2113 = vld [vmem:[#allocation11 + $0x18] sm:$0xf]
        %v2114 = vld [vmem:[#allocation11 + $0x1c] sm:$0xf]
        %v2115 = vld [vmem:[#allocation11 + $0x20] sm:$0xf]
        %v2116 = vld [vmem:[#allocation11 + $0x24] sm:$0xf]
        %v2117 = vld [vmem:[#allocation11 + $0x28] sm:$0xf]
        %v2118 = vld [vmem:[#allocation11 + $0x2c] sm:$0xf]
        %v2119 = vld [vmem:[#allocation11 + $0x30] sm:$0xf]
        %v2120 = vld [vmem:[#allocation11 + $0x34] sm:$0xf]
        %v2121 = vld [vmem:[#allocation11 + $0x38] sm:$0xf]
        %v2122 = vld [vmem:[#allocation11 + $0x3c] sm:$0xf]
        %v2139 = vunpack.c.l.b16 %v2107
        %v2140 = vunpack.c.l.b16 %v2108
        %v2141 = vunpack.c.l.b16 %v2109
        %v2142 = vunpack.c.l.b16 %v2110
        %v2143 = vunpack.c.l.b16 %v2111
        %v2144 = vunpack.c.l.b16 %v2112
        %v2145 = vunpack.c.l.b16 %v2113
        %v2146 = vunpack.c.l.b16 %v2114
        %v2147 = vunpack.c.l.b16 %v2115
        %v2148 = vunpack.c.l.b16 %v2116
        %v2149 = vunpack.c.l.b16 %v2117
        %v2150 = vunpack.c.l.b16 %v2118
        %v2151 = vunpack.c.l.b16 %v2119
        %v2152 = vunpack.c.l.b16 %v2120
        %v2153 = vunpack.c.l.b16 %v2121
        %v2154 = vunpack.c.l.b16 %v2122
        %v2155 = vpack.c.b16 %v2140, %v2139
        %v2156 = vpack.c.b16 %v2142, %v2141
        %v2157 = vpack.c.b16 %v2144, %v2143
        %v2158 = vpack.c.b16 %v2146, %v2145
        %v2159 = vpack.c.b16 %v2148, %v2147
        %v2160 = vpack.c.b16 %v2150, %v2149
        %v2161 = vpack.c.b16 %v2152, %v2151
        %v2162 = vpack.c.b16 %v2154, %v2153
        %2171 = vmatpush.bf16.msra.mxu0 %v2162
        %2172 = vmatpush.bf16.msra.mxu0 %v2161
        %2173 = vmatpush.bf16.msra.mxu0 %v2160
        %2174 = vmatpush.bf16.msra.mxu0 %v2159
        %2175 = vmatpush.bf16.msra.mxu0 %v2158
        %2176 = vmatpush.bf16.msra.mxu0 %v2157
        %2177 = vmatpush.bf16.msra.mxu0 %v2156
        %2178 = vmatpush.bf16.msra.mxu0 %v2155
        %2179 = vmatmul.bf16.gmra.mxu0 %v2099
        %v2180 = vpop.f32.mrf.mxu0
        %v2181 = vadd.f32 0.0, %v2180
        %v2182 = vpop.f32.mrf.mxu0
        %v2183 = vadd.f32 0.0, %v2182
        %2184 = vmatmul.bf16.gmra.mxu0 %v2100
        %v2185 = vpop.f32.mrf.mxu0
        %v2186 = vadd.f32 0.0, %v2185
        %v2187 = vpop.f32.mrf.mxu0
        %v2188 = vadd.f32 0.0, %v2187
        %2189 = vmatmul.bf16.gmra.mxu0 %v2101
        %v2190 = vpop.f32.mrf.mxu0
        %v2191 = vadd.f32 0.0, %v2190
        %v2192 = vpop.f32.mrf.mxu0
        %v2193 = vadd.f32 0.0, %v2192
        %2194 = vmatmul.bf16.gmra.mxu0 %v2102
        %v2195 = vpop.f32.mrf.mxu0
        %v2196 = vadd.f32 0.0, %v2195
        %v2197 = vpop.f32.mrf.mxu0
        %v2198 = vadd.f32 0.0, %v2197
        %2199 = vmatmul.bf16.gmra.mxu0 %v2103
        %v2200 = vpop.f32.mrf.mxu0
        %v2201 = vadd.f32 0.0, %v2200
        %v2202 = vpop.f32.mrf.mxu0
        %v2203 = vadd.f32 0.0, %v2202
        %2204 = vmatmul.bf16.gmra.mxu0 %v2104
        %v2205 = vpop.f32.mrf.mxu0
        %v2206 = vadd.f32 0.0, %v2205
        %v2207 = vpop.f32.mrf.mxu0
        %v2208 = vadd.f32 0.0, %v2207
        %2209 = vmatmul.bf16.gmra.mxu0 %v2105
        %v2210 = vpop.f32.mrf.mxu0
        %v2211 = vadd.f32 0.0, %v2210
        %v2212 = vpop.f32.mrf.mxu0
        %v2213 = vadd.f32 0.0, %v2212
        %2214 = vmatmul.bf16.gmra.mxu0 %v2106
        %v2215 = vpop.f32.mrf.mxu0
        %v2216 = vadd.f32 0.0, %v2215
        %v2217 = vpop.f32.mrf.mxu0
        %v2218 = vadd.f32 0.0, %v2217
        %2219 = vdwg.mxu0
        %v2220 = vadd.f32 %v547, %v2181
        %v2221 = vadd.f32 %v548, %v2183
        %v2222 = vadd.f32 %v549, %v2186
        %v2223 = vadd.f32 %v550, %v2188
        %v2224 = vadd.f32 %v551, %v2191
        %v2225 = vadd.f32 %v552, %v2193
        %v2226 = vadd.f32 %v553, %v2196
        %v2227 = vadd.f32 %v554, %v2198
        %v2228 = vadd.f32 %v555, %v2201
        %v2229 = vadd.f32 %v556, %v2203
        %v2230 = vadd.f32 %v557, %v2206
        %v2231 = vadd.f32 %v558, %v2208
        %v2232 = vadd.f32 %v559, %v2211
        %v2233 = vadd.f32 %v560, %v2213
        %v2234 = vadd.f32 %v561, %v2216
        %v2235 = vadd.f32 %v562, %v2218
        %v2236 = vld [vmem:[%s8] sm:$0x1]
        %v2238 = vperm.slane %v2236, 0
        %v2240 = vadd.f32 %v2220, %v2238
        %v2241 = vadd.f32 %v2221, %v2238
        %v2242 = vadd.f32 %v2222, %v2238
        %v2243 = vadd.f32 %v2223, %v2238
        %v2244 = vadd.f32 %v2224, %v2238
        %v2245 = vadd.f32 %v2225, %v2238
        %v2246 = vadd.f32 %v2226, %v2238
        %v2247 = vadd.f32 %v2227, %v2238
        %v2248 = vadd.f32 %v2228, %v2238
        %v2249 = vadd.f32 %v2229, %v2238
        %v2250 = vadd.f32 %v2230, %v2238
        %v2251 = vadd.f32 %v2231, %v2238
        %v2252 = vadd.f32 %v2232, %v2238
        %v2253 = vadd.f32 %v2233, %v2238
        %v2254 = vadd.f32 %v2234, %v2238
        %v2255 = vadd.f32 %v2235, %v2238
        %2256 = vst [vmem:[%s534] sm:$0xff] %v2240
        %2257 = vst [vmem:[%s534 + $0x8] sm:$0xff] %v2241
        %2258 = vst [vmem:[%s534 + $0x10] sm:$0xff] %v2242
        %2259 = vst [vmem:[%s534 + $0x18] sm:$0xff] %v2243
        %2260 = vst [vmem:[%s534 + $0x20] sm:$0xff] %v2244
        %2261 = vst [vmem:[%s534 + $0x28] sm:$0xff] %v2245
        %2262 = vst [vmem:[%s534 + $0x30] sm:$0xff] %v2246
        %2263 = vst [vmem:[%s534 + $0x38] sm:$0xff] %v2247
        %2264 = vst [vmem:[%s534 + $0x40] sm:$0xff] %v2248
        %2265 = vst [vmem:[%s534 + $0x48] sm:$0xff] %v2249
        %2266 = vst [vmem:[%s534 + $0x50] sm:$0xff] %v2250
        %2267 = vst [vmem:[%s534 + $0x58] sm:$0xff] %v2251
        %2268 = vst [vmem:[%s534 + $0x60] sm:$0xff] %v2252
        %2269 = vst [vmem:[%s534 + $0x68] sm:$0xff] %v2253
        %2270 = vst [vmem:[%s534 + $0x70] sm:$0xff] %v2254
        %2271 = vst [vmem:[%s534 + $0x78] sm:$0xff] %v2255
        %s2272 = sand.u32 %s279, 1
        %s2273 = scalar_lea.sflag [#allocation4], %s2272
        %s2274 = sand.u32 %s279, 1
        %s2275 = smul.addr %s2274, 128
        %s2276 = scalar_lea.vmem [#allocation13], %s2275
        // Predicated region
        $region81: #{tpu_custom_call.1} parent=55 // pred_check
          %p2277 = pneg %p289
        $region82: #{tpu_custom_call.1} parent=55 // pred_check_branch
          %2279 = sbr.rel (%p2277) target = $region84
        $region83: #{tpu_custom_call.1} parent=55 // pred_region
          %s2280 = smul.u32 8, %s36
          %2282 = vsyncadd %s2273, 0
          %s2283 = smul.addr %s2280, 2
          %s2284 = smul.addr %s35, 32
          %s2285 = sadd.s32 %s2283, %s2284
          %s2286 = smul.addr %s2285, 8
          %s2287 = scalar_lea.hbm %s9, %s2286
          %s2288 = sshll.u32 %s2276, 4
          %s2289 = int_to_ptr.vmem [resolvable:$true] %s2288
          %s2290 = sshll.u32 %s2287, 4
          %s2291 = int_to_ptr.hbm [resolvable:$true] %s2290
          %2296 = dma.vmem_to_hbm [thread:$0]  %s2289, 2048, %s2291, %s2273, 128, 128, 8
        $region84: #{tpu_custom_call.1} parent=55 // pred_fallthru
          _
      $region56: #{tpu_custom_call.1} parent=5 // pred_fallthru
        _
      %p2297 = scmp.le.s32.totalorder 2, %s26
      // Predicated region
      $region85: #{tpu_custom_call.1} parent=5 // pred_check
        %p2298 = pneg %p2297
      $region86: #{tpu_custom_call.1} parent=5 // pred_check_branch
        %2300 = sbr.rel (%p2298) target = $region88
      $region87: #{tpu_custom_call.1} parent=5 // pred_region
        %s2301 = ssub.s32 %s26, 2
        // Predicated region
        $region89: #{tpu_custom_call.1} parent=87 // pred_check
          %p2302 = pneg %p295
        $region90: #{tpu_custom_call.1} parent=87 // pred_check_branch
          %2304 = sbr.rel (%p2302) target = $region92
        $region91: #{tpu_custom_call.1} parent=87 // pred_region
          %s2305 = sand.u32 %s280, 1
          %s2306 = scalar_lea.sflag [#allocation4], %s2305
          %s2307 = sand.u32 %s280, 1
          %s2308 = smul.addr %s2307, 128
          %s2309 = scalar_lea.vmem [#allocation13], %s2308
          %2311 = dma.done %s2306, 2048
        $region92: #{tpu_custom_call.1} parent=87 // pred_fallthru
          _
      $region88: #{tpu_custom_call.1} parent=5 // pred_fallthru
        _
    $region6: #{tpu_custom_call.1} parent=1 // loop_footer
      %s30 = sadd.s32 1, %s26
    $region7: #{tpu_custom_call.1} parent=1 // loop_footer_branch
      %25 = sbr.rel target = $region3
    $region8: #{tpu_custom_call.1} parent=1 // loop_exit
      _
    %2312 = vsyncpa [#allocation3], 1
    %s2313 = scalar_lea.sflag [#allocation3], 1
    %2314 = vsyncpa %s2313, 1
    %2315 = vsyncpa [#allocation6], 1
    %s2316 = scalar_lea.sflag [#allocation6], 1
    %2317 = vsyncpa %s2316, 1
    %2318 = vsyncpa [#allocation9], 1
    %2319 = vsyncpa [#allocation12], 1
    %2320 = vsyncpa [#allocation4], 1
    %s2321 = scalar_lea.sflag [#allocation4], 1
    %2322 = vsyncpa %s2321, 1

</llo_original>
